<compile_context>
chip_gen: v5e
topology: v5e:2x2
jax: 0.10.0
libtpu: 0.0.40
codegen_flags: <defaults>
</compile_context>

<pallas_src>
import functools

import jax
import jax.numpy as jnp
from jax.experimental import pallas as pl
from jax.experimental.pallas import tpu as pltpu

BAND_WIDTH = 0.1
EPS_REL = 1e-5     # relative-distance epsilon (matches the reference impl)
EPS_NORM = 1e-12   # F.normalize epsilon
EPS_LOG = 1e-5     # log epsilon


def _cx_kernel(x_ref, yn_ref, mu_ref, out_ref, *, bf16_exp):
    """Grid = (batch, split, x_tile).

    x_ref  : (1, C, TX)    raw x features, channel-major (free reshape of NCHW)
    yn_ref : (1, C, HW)    pre-normalized y (bf16), resident per batch
    mu_ref : (1, C)        per-channel mean of y (f32)
    out_ref: (1, 1, 8, HW) running max of cx over this split's x tiles
                           (the 8 sublane rows are redundant copies; they and
                            the splits are max-reduced again in the wrapper)
    """
    t = pl.program_id(2)

    @pl.when(t == 0)
    def _init():
        out_ref[...] = jnp.zeros_like(out_ref)   # cx > 0, so 0 is a safe identity

    # ---- normalize the x tile (small (C,TX) -> (TX,C) transpose on the XLU)
    xt = jnp.transpose(x_ref[0].astype(jnp.float32))          # (TX, C)
    xc = xt - mu_ref[...].astype(jnp.float32)                  # (TX, C)
    ssq = jnp.sum(xc * xc, axis=-1, keepdims=True)             # (TX, 1)
    xn = (xc * jax.lax.rsqrt(jnp.maximum(ssq, EPS_NORM * EPS_NORM))
          ).astype(jnp.bfloat16)                               # (TX, C) bf16

    # cosine similarity on the MXU: (TX, C) @ (C, HW), f32 accumulation
    sim = jax.lax.dot_general(
        xn, yn_ref[0], (((1,), (0,)), ((), ())),
        preferred_element_type=jnp.float32)                    # (TX, HW)

    # ---- fused relative-distance -> weights --------------------------------
    # dist = max(1 - sim, 0)  (clamp guards bf16 rounding pushing sim > 1)
    # dist_min = min_row(dist) = max(1 - max_row(sim), 0)
    sim_max = jnp.max(sim, axis=-1, keepdims=True)             # (TX, 1)
    dist_min = jnp.maximum(1.0 - sim_max, 0.0)
    # exp((1 - d~)/h) == exp(1/h) * exp(-d~/h); the constant cancels in the
    # row normalization below, so it is dropped.  neg_inv folds -1/h into the
    # per-row scalar (exact reciprocal: TX values, negligible cost).
    neg_inv = (-1.0 / BAND_WIDTH) / (dist_min + EPS_REL)       # (TX, 1)
    arg = jnp.maximum(1.0 - sim, 0.0) * neg_inv                # (TX, HW)
    if bf16_exp:   # v6e / v7x: bf16 EUP path (~2x transcendental throughput)
        w = jnp.exp(arg.astype(jnp.bfloat16)).astype(jnp.float32)
    else:          # v5e / older: no bf16 EUP, keep f32
        w = jnp.exp(arg)
    inv_wsum = 1.0 / jnp.sum(w, axis=-1, keepdims=True)        # exact, per-row
    cx = w * inv_wsum                                          # (TX, HW)

    # running max over x positions for every y position
    tile_max = jnp.max(cx, axis=0, keepdims=True)              # (1, HW)
    out_ref[0, 0, :, :] = jnp.maximum(out_ref[0, 0, :, :], tile_max)


def _tpu_flavor():
    """(small_vmem, bf16_eup) derived from the attached TPU generation."""
    kind = ""
    try:
        kind = jax.devices()[0].device_kind.lower()
    except Exception:
        pass
    small_vmem = "v7" in kind                                  # v7x: 64 MiB VMEM/core
    bf16_eup = not any(v in kind for v in ("v2", "v3", "v4", "v5"))
    return small_vmem, bf16_eup


def _pick_tx(hw, cap):
    """Largest power-of-two multiple of 128 dividing HW (capped); else HW."""
    tx = cap
    while tx >= 128:
        if hw % tx == 0:
            return tx
        tx //= 2
    return hw   # single tile along x (small / odd spatial sizes)


def contextual_loss_pallas(x_nchw, y_nchw, *, tx=None):
    """Contextual loss (cosine, band_width=0.1) of x vs y; inputs are NCHW."""
    N, C, H, W = x_nchw.shape
    assert y_nchw.shape == x_nchw.shape
    HW = H * W

    small_vmem, bf16_eup = _tpu_flavor()
    if tx is None:
        tx = _pick_tx(HW, 256 if small_vmem else 512)
    assert HW % tx == 0, (HW, tx)
    n_tx = HW // tx
    nsplit = 2 if (n_tx >= 2 and n_tx % 2 == 0) else 1         # keeps both v7x TCs busy
    tiles = n_tx // nsplit

    # x stays channel-major: (N, C, HW) is a free reshape of NCHW (no HBM pass).
    x = x_nchw.reshape(N, C, HW)

    # y is mean-shifted + L2-normalized once here (bf16): halves the per-batch
    # DMA and removes all f32 y buffers from kernel VMEM.
    y = y_nchw.reshape(N, C, HW).astype(jnp.float32)
    y_mu = jnp.mean(y, axis=(0, 2))                            # (C,)
    yc = y - y_mu[None, :, None]
    ynorm = jnp.maximum(jnp.sqrt(jnp.sum(yc * yc, axis=1, keepdims=True)), EPS_NORM)
    yn = (yc / ynorm).astype(jnp.bfloat16)                     # (N, C, HW)
    mu_r = y_mu.reshape(1, C).astype(jnp.float32)

    kernel = functools.partial(_cx_kernel, bf16_exp=bf16_eup)

    out = pl.pallas_call(
        kernel,
        out_shape=jax.ShapeDtypeStruct((N, nsplit, 8, HW), jnp.float32),
        grid_spec=pltpu.PrefetchScalarGridSpec(
            num_scalar_prefetch=0,
            grid=(N, nsplit, tiles),
            in_specs=[
                pl.BlockSpec((1, C, tx), lambda n, c, t: (n, 0, c * tiles + t)),
                pl.BlockSpec((1, C, HW), lambda n, c, t: (n, 0, 0)),   # y, resident
                pl.BlockSpec((1, C), lambda n, c, t: (0, 0)),          # channel mean
            ],
            out_specs=pl.BlockSpec((1, 1, 8, HW), lambda n, c, t: (n, c, 0, 0)),
        ),
        compiler_params=pltpu.CompilerParams(
            dimension_semantics=("parallel", "parallel", "arbitrary"),
            vmem_limit_bytes=(56 if small_vmem else 96) * 1024 * 1024,
        ),
    )(x, yn, mu_r)

    cx_max = jnp.max(out, axis=(1, 2))           # (N, HW): combine splits (+ redundant rows)
    cx_b = jnp.mean(cx_max, axis=-1)             # (N,)
    return jnp.mean(-jnp.log(cx_b + EPS_LOG))


def contextual_loss_ref(x, y, band_width=BAND_WIDTH):
    """Pure-JAX reference mirroring contextual_loss.functional.contextual_loss."""
    N, C, H, W = x.shape
    y_mu = jnp.mean(y, axis=(0, 2, 3), keepdims=True)
    xc = x - y_mu
    yc = y - y_mu
    xn = xc / jnp.maximum(
        jnp.sqrt(jnp.sum(xc * xc, axis=1, keepdims=True)), EPS_NORM)
    yn = yc / jnp.maximum(
        jnp.sqrt(jnp.sum(yc * yc, axis=1, keepdims=True)), EPS_NORM)
    xn = xn.reshape(N, C, -1)
    yn = yn.reshape(N, C, -1)
    sim = jnp.einsum('ncq,nck->nqk', xn, yn)          # (N, HW_x, HW_y)
    dist = 1.0 - sim
    dist_min = jnp.min(dist, axis=2, keepdims=True)
    dist_tilde = dist / (dist_min + EPS_REL)
    w = jnp.exp((1.0 - dist_tilde) / band_width)
    cx = w / jnp.sum(w, axis=2, keepdims=True)
    cx = jnp.mean(jnp.max(cx, axis=1), axis=1)        # (N,)
    return jnp.mean(-jnp.log(cx + EPS_LOG))


if __name__ == "__main__":
    # Small stand-ins for VGG relu4_2 features (real shape would be (N,512,h,w)).
    # HW=512 with tx=128 -> 4 x-tiles -> 2 parallel splits x 2 sequential tiles,
    # exercising both the running-max accumulation and the split combine.
    N, C, H, W = 2, 32, 16, 32
    key = jax.random.PRNGKey(0)
    kx, ky = jax.random.split(key)
    x_vgg_relu4_2 = jax.random.normal(kx, (N, C, H, W), dtype=jnp.float32)
    y_vgg_relu4_2 = jax.random.normal(ky, (N, C, H, W), dtype=jnp.float32)

    loss = jax.block_until_ready(
        contextual_loss_pallas(x_vgg_relu4_2, y_vgg_relu4_2, tx=128))
    ref = jax.block_until_ready(
        contextual_loss_ref(x_vgg_relu4_2, y_vgg_relu4_2))

    # bf16 MXU similarities (and, on v6e/v7x, bf16 exp arguments) feed through
    # exp(./0.1), so the final scalar is only accurate to a few percent.
    assert jnp.allclose(loss, ref, rtol=6e-2, atol=6e-2), (loss, ref)
    # TODO(synk): original forward() returns None (source bug); we return the
    # computed contextual-loss scalar instead.
    print("KERNEL_OK")
</pallas_src>

<mosaic_0001>
module attributes {stable_mosaic.version = 11 : i64} {
  func.func @_cx_kernel(%arg0: i32, %arg1: i32, %arg2: i32, %arg3: memref<1x32x128xf32, #tpu.memory_space<vmem>>, %arg4: memref<1x32x512xbf16, #tpu.memory_space<vmem>>, %arg5: memref<1x32xf32, #tpu.memory_space<vmem>>, %arg6: memref<1x1x8x512xf32, #tpu.memory_space<vmem>>) attributes {dimension_semantics = [#tpu.dimension_semantics<parallel>, #tpu.dimension_semantics<parallel>, #tpu.dimension_semantics<arbitrary>], iteration_bounds = array<i64: 2, 2, 2>, scalar_prefetch = 0 : i64, scratch_operands = 0 : i64, tpu.core_type = #tpu.core_type<tc>, window_params = [{transform_indices = @transform_0, window_bounds = array<i64: 1, 32, 128>}, {transform_indices = @transform_1, window_bounds = array<i64: 1, 32, 512>}, {pipeline_mode = #tpu.pipeline_mode<synchronous>, transform_indices = @transform_2, window_bounds = array<i64: 1, 32>}, {transform_indices = @transform_3, window_bounds = array<i64: 1, 1, 8, 512>}]} {
    %c0_i32 = arith.constant 0 : i32
    %0 = arith.cmpi eq, %arg2, %c0_i32 : i32
    %1 = arith.extui %0 : i1 to i32
    %c0_i32_0 = arith.constant 0 : i32
    %2 = arith.cmpi ne, %1, %c0_i32_0 : i32
    scf.if %2 {
      %cst_28 = arith.constant 0.000000e+00 : f32
      %55 = vector.broadcast %cst_28 : f32 to vector<1x1x8x512xf32>
      %c0_29 = arith.constant 0 : index
      %c0_30 = arith.constant 0 : index
      %c0_31 = arith.constant 0 : index
      %c0_32 = arith.constant 0 : index
      %56 = vector.load %arg6[%c0_29, %c0_30, %c0_31, %c0_32] : memref<1x1x8x512xf32, #tpu.memory_space<vmem>>, vector<1x1x8x512xf32>
      tpu.vector_store %arg6[%c0_29, %c0_30, %c0_31, %c0_32], %55 {strides = array<i32>} : memref<1x1x8x512xf32, #tpu.memory_space<vmem>>, vector<1x1x8x512xf32>,
    } else {
    }
    %c0 = arith.constant 0 : index
    %c0_1 = arith.constant 0 : index
    %c0_2 = arith.constant 0 : index
    %3 = vector.load %arg3[%c0, %c0_1, %c0_2] : memref<1x32x128xf32, #tpu.memory_space<vmem>>, vector<1x32x128xf32>
    %4 = vector.shape_cast %3 : vector<1x32x128xf32> to vector<32x128xf32>
    %5 = tpu.transpose %4, [1, 0] : vector<32x128xf32> -> vector<128x32xf32>
    %c0_3 = arith.constant 0 : index
    %c0_4 = arith.constant 0 : index
    %6 = vector.load %arg5[%c0_3, %c0_4] : memref<1x32xf32, #tpu.memory_space<vmem>>, vector<1x32xf32>
    %7 = vector.broadcast %6 : vector<1x32xf32> to vector<128x32xf32>
    %8 = arith.subf %5, %7 : vector<128x32xf32>
    %9 = arith.mulf %8, %8 : vector<128x32xf32>
    %cst = arith.constant dense<0.000000e+00> : vector<128xf32>
    %10 = vector.multi_reduction <add>, %9, %cst [1] : vector<128x32xf32> to vector<128xf32>
    %11 = vector.shape_cast %10 : vector<128xf32> to vector<128x1xf32>
    %cst_5 = arith.constant 1.000000e-24 : f32
    %12 = vector.broadcast %cst_5 : f32 to vector<128x1xf32>
    %13 = arith.maximumf %11, %12 : vector<128x1xf32>
    %14 = math.rsqrt %13 : vector<128x1xf32>
    %15 = vector.broadcast %14 : vector<128x1xf32> to vector<128x32xf32>
    %16 = arith.mulf %8, %15 : vector<128x32xf32>
    %17 = arith.truncf %16 : vector<128x32xf32> to vector<128x32xbf16>
    %c0_6 = arith.constant 0 : index
    %c0_7 = arith.constant 0 : index
    %c0_8 = arith.constant 0 : index
    %18 = vector.load %arg4[%c0_6, %c0_7, %c0_8] : memref<1x32x512xbf16, #tpu.memory_space<vmem>>, vector<1x32x512xbf16>
    %19 = vector.shape_cast %18 : vector<1x32x512xbf16> to vector<32x512xbf16>
    %cst_9 = arith.constant dense<0.000000e+00> : vector<128x512xf32>
    %20 = tpu.matmul %17, %19, %cst_9 {dimension_numbers = #tpu.dot_dimension_numbers<[1], [0], [0], [1], [0, 0, 1, 1], [], []>} : vector<128x32xbf16>, vector<32x512xbf16>, vector<128x512xf32> -> vector<128x512xf32>
    %cst_10 = arith.constant dense<0xFF800000> : vector<128xf32>
    %21 = vector.multi_reduction <maximumf>, %20, %cst_10 [1] : vector<128x512xf32> to vector<128xf32>
    %22 = vector.shape_cast %21 : vector<128xf32> to vector<128x1xf32>
    %cst_11 = arith.constant 1.000000e+00 : f32
    %23 = vector.broadcast %cst_11 : f32 to vector<128x1xf32>
    %24 = arith.subf %23, %22 : vector<128x1xf32>
    %cst_12 = arith.constant 0.000000e+00 : f32
    %25 = vector.broadcast %cst_12 : f32 to vector<128x1xf32>
    %26 = arith.maximumf %24, %25 : vector<128x1xf32>
    %cst_13 = arith.constant 9.99999974E-6 : f32
    %27 = vector.broadcast %cst_13 : f32 to vector<128x1xf32>
    %28 = arith.addf %26, %27 : vector<128x1xf32>
    %cst_14 = arith.constant -1.000000e+01 : f32
    %29 = vector.broadcast %cst_14 : f32 to vector<128x1xf32>
    %30 = arith.divf %29, %28 : vector<128x1xf32>
    %cst_15 = arith.constant 1.000000e+00 : f32
    %31 = vector.broadcast %cst_15 : f32 to vector<128x512xf32>
    %32 = arith.subf %31, %20 : vector<128x512xf32>
    %cst_16 = arith.constant 0.000000e+00 : f32
    %33 = vector.broadcast %cst_16 : f32 to vector<128x512xf32>
    %34 = arith.maximumf %32, %33 : vector<128x512xf32>
    %35 = vector.broadcast %30 : vector<128x1xf32> to vector<128x512xf32>
    %36 = arith.mulf %34, %35 : vector<128x512xf32>
    %37 = arith.truncf %36 : vector<128x512xf32> to vector<128x512xbf16>
    %38 = math.exp %37 : vector<128x512xbf16>
    %39 = arith.extf %38 : vector<128x512xbf16> to vector<128x512xf32>
    %cst_17 = arith.constant dense<0.000000e+00> : vector<128xf32>
    %40 = vector.multi_reduction <add>, %39, %cst_17 [1] : vector<128x512xf32> to vector<128xf32>
    %41 = vector.shape_cast %40 : vector<128xf32> to vector<128x1xf32>
    %cst_18 = arith.constant 1.000000e+00 : f32
    %42 = vector.broadcast %cst_18 : f32 to vector<128x1xf32>
    %43 = arith.divf %42, %41 : vector<128x1xf32>
    %44 = vector.broadcast %43 : vector<128x1xf32> to vector<128x512xf32>
    %45 = arith.mulf %39, %44 : vector<128x512xf32>
    %cst_19 = arith.constant dense<0xFF800000> : vector<512xf32>
    %46 = vector.multi_reduction <maximumf>, %45, %cst_19 [0] : vector<128x512xf32> to vector<512xf32>
    %47 = vector.shape_cast %46 : vector<512xf32> to vector<1x512xf32>
    %c0_20 = arith.constant 0 : index
    %c0_21 = arith.constant 0 : index
    %c0_22 = arith.constant 0 : index
    %c0_23 = arith.constant 0 : index
    %48 = vector.load %arg6[%c0_20, %c0_21, %c0_22, %c0_23] : memref<1x1x8x512xf32, #tpu.memory_space<vmem>>, vector<1x1x8x512xf32>
    %49 = vector.shape_cast %48 : vector<1x1x8x512xf32> to vector<8x512xf32>
    %50 = vector.broadcast %47 : vector<1x512xf32> to vector<8x512xf32>
    %51 = arith.maximumf %49, %50 : vector<8x512xf32>
    %c0_24 = arith.constant 0 : index
    %c0_25 = arith.constant 0 : index
    %c0_26 = arith.constant 0 : index
    %c0_27 = arith.constant 0 : index
    %52 = vector.load %arg6[%c0_24, %c0_25, %c0_26, %c0_27] : memref<1x1x8x512xf32, #tpu.memory_space<vmem>>, vector<1x1x8x512xf32>
    %53 = vector.shape_cast %52 : vector<1x1x8x512xf32> to vector<8x512xf32>
    %54 = vector.shape_cast %51 : vector<8x512xf32> to vector<1x1x8x512xf32>
    tpu.vector_store %arg6[%c0_24, %c0_25, %c0_26, %c0_27], %54 {strides = array<i32>} : memref<1x1x8x512xf32, #tpu.memory_space<vmem>>, vector<1x1x8x512xf32>,
    return
  }
  func.func @transform_0(%arg0: i32, %arg1: i32, %arg2: i32) -> (i32, i32, i32) {
    %c2_i32 = arith.constant 2 : i32
    %0 = arith.muli %arg1, %c2_i32 : i32
    %1 = arith.addi %0, %arg2 : i32
    %c0_i32 = arith.constant 0 : i32
    %c0_i32_0 = arith.constant 0 : i32
    return %arg0, %c0_i32, %1 : i32, i32, i32
  }
  func.func @transform_1(%arg0: i32, %arg1: i32, %arg2: i32) -> (i32, i32, i32) {
    %c0_i32 = arith.constant 0 : i32
    %c0_i32_0 = arith.constant 0 : i32
    %c0_i32_1 = arith.constant 0 : i32
    return %arg0, %c0_i32, %c0_i32_0 : i32, i32, i32
  }
  func.func @transform_2(%arg0: i32, %arg1: i32, %arg2: i32) -> (i32, i32) {
    %c0_i32 = arith.constant 0 : i32
    %c0_i32_0 = arith.constant 0 : i32
    %c0_i32_1 = arith.constant 0 : i32
    return %c0_i32, %c0_i32_0 : i32, i32
  }
  func.func @transform_3(%arg0: i32, %arg1: i32, %arg2: i32) -> (i32, i32, i32, i32) {
    %c0_i32 = arith.constant 0 : i32
    %c0_i32_0 = arith.constant 0 : i32
    %c0_i32_1 = arith.constant 0 : i32
    return %arg0, %arg1, %c0_i32, %c0_i32_0 : i32, i32, i32, i32
  }
}

</mosaic_0001>

<llo_original>
// kernel: tpu_custom_call.1
$region0: #{tpu_custom_call.1}
  #allocation0 [shape = 'u32[]', space=smem, size = 0x4, offset = 0x4, fixed_abs, tag = 'smem constant byte address 0x4 - core index']
  #allocation1 [shape = 'u32[72,128]{1,0:T(1,128)}', space=vmem, size = 0x9000, scoped, tag = 'internal scratch']
  %s0 = inlined_call_operand.hbm [shape: f32[2,32,512], index: 0, kind: input, shape index: {}]
  %s1 = inlined_call_operand.hbm [shape: bf16[2,32,512], index: 1, kind: input, shape index: {}]
  %s2 = inlined_call_operand.vmem [shape: f32[1,32], index: 2, kind: input, shape index: {}]
  %s3 = inlined_call_operand.hbm [shape: f32[2,2,8,512], index: 3, kind: output, shape index: {}]
  %s4 = sld [smem:[#allocation0]]
  $region57: #{tpu_custom_call.1} parent=0
    _
  %s6 = ssub.s32 1, %s4
  %s7 = scalar_select 0, %s6, %s4
  $region1: #{tpu_custom_call.1} parent=0
    #allocation2 [shape = 'u8[32768]{0}', space=vmem, size = 0x8000, scoped, tag = 'input window, operand 0']
    #allocation3 [shape = 's32[2]{0}', space=sflag, size = 0x8, scoped, tag = 'scoped memory for tpu_custom_call.1']
    #allocation4 [shape = 's32[2]{0}', space=sflag, size = 0x8, scoped, tag = 'scoped memory for tpu_custom_call.1']
    #allocation5 [shape = 'u8[65536]{0}', space=vmem, size = 0x10000, scoped, tag = 'input window, operand 1']
    #allocation6 [shape = 's32[2]{0}', space=sflag, size = 0x8, scoped, tag = 'scoped memory for tpu_custom_call.1']
    #allocation7 [shape = 'u8[32768]{0}', space=vmem, size = 0x8000, scoped, tag = 'output window, operand 0']
    %8 = vsyncpa [#allocation3], 0
    %s9 = scalar_lea.sflag [#allocation3], 1
    %10 = vsyncpa %s9, 0
    %11 = vsyncpa [#allocation6], 0
    %s12 = scalar_lea.sflag [#allocation6], 1
    %13 = vsyncpa %s12, 0
    %14 = vsyncpa [#allocation4], 0
    %s15 = scalar_lea.sflag [#allocation4], 1
    %16 = vsyncpa %s15, 0
    loop: start=0, step=1, limit=10
    $region2: #{tpu_custom_call.1} parent=1 // loop_pre_header
      _
    $region3: #{tpu_custom_call.1} parent=1 // loop_header
      %s18 = sphi 0, %s22
      %p19 = scmp.ge.s32.totalorder %s18, 10
      %s25 = sphi 0, %s44
      %s26 = sphi 0, %s40
      %s27 = sphi 0, %s36
      %s28 = sphi 0, %s25
      %s29 = sphi 0, %s26
      %s30 = sphi 0, %s27
      %s31 = sphi 0, %s28
      %s32 = sphi 0, %s29
      %s33 = sphi 0, %s30
      %s53 = sphi 0, %s55
      %s56 = sphi 0, %s53
      %s57 = sphi 0, %s56
      %s73 = sphi 0, %s57
      %s79 = sphi 0, %s81
      %s82 = sphi 0, %s79
      %s83 = sphi 0, %s82
      %s99 = sphi 0, %s83
      %s103 = sphi 0, %s103
      %s105 = sphi 0, %s103
      %s106 = sphi 0, %s105
      %s120 = sphi 0, %s106
      %s128 = sphi 0, %s130
      %s131 = sphi 0, %s128
      %s132 = sphi 0, %s131
      %s148 = sphi 0, %s132
    $region4: #{tpu_custom_call.1} parent=1 // loop_header_branch
      %21 = sbr.rel (%p19) target = $region8
    $region5: #{tpu_custom_call.1} parent=1 // loop_body
      %s23 = ssub.s32 %s18, 1
      %s24 = ssub.s32 %s18, 2
      %s34 = sadd.s32 1, %s27
      %p35 = scmp.ge.s32.totalorder %s34, 2
      %s36 = scalar_select %p35, 0, %s34
      %s37 = sadd.s32 1, %s26
      %s38 = scalar_select %p35, %s37, %s26
      %p39 = scmp.ge.s32.totalorder %s38, 2
      %s40 = scalar_select %p39, 0, %s38
      %s41 = sadd.s32 1, %s25
      %s42 = scalar_select %p39, %s41, %s25
      %p43 = scmp.ge.s32.totalorder %s42, 2
      %s44 = scalar_select %p43, 0, %s42
      %s45 = smul.u32 %s26, 2
      %s46 = sadd.s32 %s45, %s27
      %s47 = smul.u32 %s40, 2
      %s48 = sadd.s32 %s47, %s36
      %s49 = ssub.s32 %s25, %s44
      %s50 = ssub.s32 %s46, %s48
      %s51 = sor.u32 %s49, %s50
      %p52 = scmp.eq.s32.totalorder %s51, 0
      %s54 = sadd.s32 %s53, 1
      %s55 = scalar_select %p52, %s53, %s54
      %p58 = pneg %p52
      %p59 = scmp.eq.s32.totalorder %s18, 7
      %p60 = por %p58, %p59
      %p61 = scmp.ne.s32.totalorder %s53, %s56
      %p62 = scmp.eq.s32.totalorder %s18, 0
      %p63 = por %p61, %p62
      %p64 = scmp.ne.s32.totalorder %s53, %s56
      %p65 = scmp.eq.s32.totalorder %s23, 7
      %p66 = por %p64, %p65
      %p67 = scmp.ne.s32.totalorder %s56, %s57
      %p68 = scmp.eq.s32.totalorder %s23, 0
      %p69 = por %p67, %p68
      %p70 = scmp.ne.s32.totalorder %s56, %s57
      %p71 = scmp.eq.s32.totalorder %s24, 7
      %p72 = por %p70, %p71
      %p74 = scmp.ne.s32.totalorder %s57, %s73
      %p75 = scmp.eq.s32.totalorder %s24, 0
      %p76 = por %p74, %p75
      %s77 = ssub.s32 %s25, %s44
      %p78 = scmp.eq.s32.totalorder %s77, 0
      %s80 = sadd.s32 %s79, 1
      %s81 = scalar_select %p78, %s79, %s80
      %p84 = pneg %p78
      %p85 = scmp.eq.s32.totalorder %s18, 7
      %p86 = por %p84, %p85
      %p87 = scmp.ne.s32.totalorder %s79, %s82
      %p88 = scmp.eq.s32.totalorder %s18, 0
      %p89 = por %p87, %p88
      %p90 = scmp.ne.s32.totalorder %s79, %s82
      %p91 = scmp.eq.s32.totalorder %s23, 7
      %p92 = por %p90, %p91
      %p93 = scmp.ne.s32.totalorder %s82, %s83
      %p94 = scmp.eq.s32.totalorder %s23, 0
      %p95 = por %p93, %p94
      %p96 = scmp.ne.s32.totalorder %s82, %s83
      %p97 = scmp.eq.s32.totalorder %s24, 7
      %p98 = por %p96, %p97
      %p100 = scmp.ne.s32.totalorder %s83, %s99
      %p101 = scmp.eq.s32.totalorder %s24, 0
      %p102 = por %p100, %p101
      %s104 = sadd.s32 %s103, 1
      %p107 = scmp.eq.s32.totalorder %s18, 7
      %p108 = scmp.ne.s32.totalorder %s103, %s105
      %p109 = scmp.eq.s32.totalorder %s18, 0
      %p110 = por %p108, %p109
      %p111 = scmp.ne.s32.totalorder %s103, %s105
      %p112 = scmp.eq.s32.totalorder %s23, 7
      %p113 = por %p111, %p112
      %p114 = scmp.ne.s32.totalorder %s105, %s106
      %p115 = scmp.eq.s32.totalorder %s23, 0
      %p116 = por %p114, %p115
      %p117 = scmp.ne.s32.totalorder %s105, %s106
      %p118 = scmp.eq.s32.totalorder %s24, 7
      %p119 = por %p117, %p118
      %p121 = scmp.ne.s32.totalorder %s106, %s120
      %p122 = scmp.eq.s32.totalorder %s24, 0
      %p123 = por %p121, %p122
      %s124 = ssub.s32 %s25, %s44
      %s125 = ssub.s32 %s26, %s40
      %s126 = sor.u32 %s124, %s125
      %p127 = scmp.eq.s32.totalorder %s126, 0
      %s129 = sadd.s32 %s128, 1
      %s130 = scalar_select %p127, %s128, %s129
      %p133 = pneg %p127
      %p134 = scmp.eq.s32.totalorder %s18, 7
      %p135 = por %p133, %p134
      %p136 = scmp.ne.s32.totalorder %s128, %s131
      %p137 = scmp.eq.s32.totalorder %s18, 0
      %p138 = por %p136, %p137
      %p139 = scmp.ne.s32.totalorder %s128, %s131
      %p140 = scmp.eq.s32.totalorder %s23, 7
      %p141 = por %p139, %p140
      %p142 = scmp.ne.s32.totalorder %s131, %s132
      %p143 = scmp.eq.s32.totalorder %s23, 0
      %p144 = por %p142, %p143
      %p145 = scmp.ne.s32.totalorder %s131, %s132
      %p146 = scmp.eq.s32.totalorder %s24, 7
      %p147 = por %p145, %p146
      %p149 = scmp.ne.s32.totalorder %s132, %s148
      %p150 = scmp.eq.s32.totalorder %s24, 0
      %p151 = por %p149, %p150
      %p152 = scmp.le.s32.totalorder 1, %s18
      %p153 = scmp.lt.s32.totalorder %s18, 9
      %p154 = pnand %p152, %p153
      %p155 = pneg %p154
      // Predicated region
      $region9: #{tpu_custom_call.1} parent=5 // pred_check
        _
      $region10: #{tpu_custom_call.1} parent=5 // pred_check_branch
        %157 = sbr.rel (%p154) target = $region12
      $region11: #{tpu_custom_call.1} parent=5 // pred_region
        %s158 = ssub.s32 %s18, 1
        // Predicated region
        $region13: #{tpu_custom_call.1} parent=11 // pred_check
          %p159 = pneg %p116
        $region14: #{tpu_custom_call.1} parent=11 // pred_check_branch
          %161 = sbr.rel (%p159) target = $region16
        $region15: #{tpu_custom_call.1} parent=11 // pred_region
          _
        $region16: #{tpu_custom_call.1} parent=11 // pred_fallthru
          _
      $region12: #{tpu_custom_call.1} parent=5 // pred_fallthru
        _
      %p162 = scmp.lt.s32.totalorder %s18, 8
      // Predicated region
      $region17: #{tpu_custom_call.1} parent=5 // pred_check
        %p163 = pneg %p162
      $region18: #{tpu_custom_call.1} parent=5 // pred_check_branch
        %165 = sbr.rel (%p163) target = $region20
      $region19: #{tpu_custom_call.1} parent=5 // pred_region
        // Predicated region
        $region21: #{tpu_custom_call.1} parent=19 // pred_check
          %p166 = pneg %p63
        $region22: #{tpu_custom_call.1} parent=19 // pred_check_branch
          %168 = sbr.rel (%p166) target = $region24
        $region23: #{tpu_custom_call.1} parent=19 // pred_region
          %s169 = sand.u32 %s53, 1
          %s170 = scalar_lea.sflag [#allocation3], %s169
          %s171 = sand.u32 %s53, 1
          %s172 = smul.addr %s171, 32
          %s173 = scalar_lea.vmem [#allocation2], %s172
          %s174 = smul.u32 %s26, 2
          %s175 = sadd.s32 %s174, %s27
          %177 = vsyncadd %s170, 0
          %s178 = smul.addr %s25, 16
          %s179 = sadd.s32 %s175, %s178
          %s180 = smul.addr %s179, 8
          %s181 = scalar_lea.hbm %s0, %s180
          %s182 = sshll.u32 %s181, 4
          %s183 = int_to_ptr.hbm [resolvable:$true] %s182
          %s184 = sshll.u32 %s173, 4
          %s185 = int_to_ptr.vmem [resolvable:$true] %s184
          %190 = dma.hbm_to_vmem [thread:$0]  %s183, 512, %s185, %s170, 512, 128, 8
        $region24: #{tpu_custom_call.1} parent=19 // pred_fallthru
          _
        // Predicated region
        $region25: #{tpu_custom_call.1} parent=19 // pred_check
          %p191 = pneg %p89
        $region26: #{tpu_custom_call.1} parent=19 // pred_check_branch
          %193 = sbr.rel (%p191) target = $region28
        $region27: #{tpu_custom_call.1} parent=19 // pred_region
          %s194 = sand.u32 %s79, 1
          %s195 = scalar_lea.sflag [#allocation6], %s194
          %s196 = sand.u32 %s79, 1
          %s197 = smul.addr %s196, 64
          %s198 = scalar_lea.vmem [#allocation5], %s197
          %200 = vsyncadd %s195, 0
          %s201 = smul.addr %s25, 16
          %s202 = smul.addr %s201, 4
          %s203 = scalar_lea.hbm %s1, %s202
          %s204 = sshll.u32 %s203, 4
          %s205 = int_to_ptr.hbm [resolvable:$true] %s204
          %s206 = sshll.u32 %s198, 4
          %s207 = int_to_ptr.vmem [resolvable:$true] %s206
          %212 = dma.hbm_to_vmem [thread:$0]  %s205, 1024, %s207, %s195, 256, 256, 16
        $region28: #{tpu_custom_call.1} parent=19 // pred_fallthru
          _
      $region20: #{tpu_custom_call.1} parent=5 // pred_fallthru
        _
      %p213 = scmp.le.s32.totalorder 1, %s18
      %p214 = scmp.lt.s32.totalorder %s18, 9
      %p215 = pnand %p213, %p214
      %p216 = pneg %p215
      // Predicated region
      $region29: #{tpu_custom_call.1} parent=5 // pred_check
        _
      $region30: #{tpu_custom_call.1} parent=5 // pred_check_branch
        %218 = sbr.rel (%p215) target = $region32
      $region31: #{tpu_custom_call.1} parent=5 // pred_region
        %s219 = ssub.s32 %s18, 1
        %s220 = sand.u32 %s56, 1
        %s221 = scalar_lea.sflag [#allocation3], %s220
        %s222 = sand.u32 %s56, 1
        %s223 = smul.addr %s222, 32
        %s224 = scalar_lea.vmem [#allocation2], %s223
        // Predicated region
        $region33: #{tpu_custom_call.1} parent=31 // pred_check
          %p225 = pneg %p69
        $region34: #{tpu_custom_call.1} parent=31 // pred_check_branch
          %227 = sbr.rel (%p225) target = $region36
        $region35: #{tpu_custom_call.1} parent=31 // pred_region
          %229 = dma.done %s221, 512
        $region36: #{tpu_custom_call.1} parent=31 // pred_fallthru
          _
        %s230 = sand.u32 %s82, 1
        %s231 = scalar_lea.sflag [#allocation6], %s230
        %s232 = sand.u32 %s82, 1
        %s233 = smul.addr %s232, 64
        %s234 = scalar_lea.vmem [#allocation5], %s233
        // Predicated region
        $region37: #{tpu_custom_call.1} parent=31 // pred_check
          %p235 = pneg %p95
        $region38: #{tpu_custom_call.1} parent=31 // pred_check_branch
          %237 = sbr.rel (%p235) target = $region40
        $region39: #{tpu_custom_call.1} parent=31 // pred_region
          %239 = dma.done %s231, 1024
        $region40: #{tpu_custom_call.1} parent=31 // pred_fallthru
          _
        %s240 = sand.u32 %s56, 1
        %s241 = scalar_lea.sflag [#allocation3], %s240
        %s242 = sand.u32 %s56, 1
        %s243 = smul.addr %s242, 32
        %s244 = scalar_lea.vmem [#allocation2], %s243
        %p245 = pneg %p69
        %p246 = pneg %p66
        %s247 = sand.u32 %s82, 1
        %s248 = scalar_lea.sflag [#allocation6], %s247
        %s249 = sand.u32 %s82, 1
        %s250 = smul.addr %s249, 64
        %s251 = scalar_lea.vmem [#allocation5], %s250
        %p252 = pneg %p95
        %p253 = pneg %p92
        %p254 = pneg %p116
        %p255 = pneg %p113
        %p256 = pneg %p144
        %p257 = pneg %p141
        %s258 = sand.u32 %s131, 1
        %s259 = scalar_lea.sflag [#allocation4], %s258
        %s260 = sand.u32 %s131, 1
        %s261 = smul.addr %s260, 32
        %s262 = scalar_lea.vmem [#allocation7], %s261
        %s263 = smul.u32 %s29, 2
        %s264 = sadd.s32 %s263, %s30
        %p266 = scmp.eq.s32.totalorder %s30, 0
        // Predicated region
        $region41: #{tpu_custom_call.1} parent=31 // pred_check
          %p267 = pneg %p266
        $region42: #{tpu_custom_call.1} parent=31 // pred_check_branch
          %269 = sbr.rel (%p267) target = $region44
        $region43: #{tpu_custom_call.1} parent=31 // pred_region
          %270 = vst [vmem:[%s262] sm:$0xff] 0.0
          %271 = vst [vmem:[%s262 + $0x8] sm:$0xff] 0.0
          %272 = vst [vmem:[%s262 + $0x10] sm:$0xff] 0.0
          %273 = vst [vmem:[%s262 + $0x18] sm:$0xff] 0.0
        $region44: #{tpu_custom_call.1} parent=31 // pred_fallthru
          _
        %v274 = vld [vmem:[%s224] sm:$0xff]
        %v275 = vld [vmem:[%s224 + $0x8] sm:$0xff]
        %v276 = vld [vmem:[%s224 + $0x10] sm:$0xff]
        %v277 = vld [vmem:[%s224 + $0x18] sm:$0xff]
        %278 = vxpose.xlu0.b32.start [1/16] %v274, 128
        %279 = vxpose.xlu0.b32.cont [2/16] %v275, 128
        %280 = vxpose.xlu0.b32.cont [3/16] %v276, 128
        %281 = vxpose.xlu0.b32.cont [4/16] %v277, 128
        %282 = vxpose.xlu0.b32.cont [5/16] 0.0, 128
        %283 = vxpose.xlu0.b32.cont [6/16] 0.0, 128
        %284 = vxpose.xlu0.b32.cont [7/16] 0.0, 128
        %285 = vxpose.xlu0.b32.cont [8/16] 0.0, 128
        %286 = vxpose.xlu0.b32.cont [9/16] 0.0, 128
        %287 = vxpose.xlu0.b32.cont [10/16] 0.0, 128
        %288 = vxpose.xlu0.b32.cont [11/16] 0.0, 128
        %289 = vxpose.xlu0.b32.cont [12/16] 0.0, 128
        %290 = vxpose.xlu0.b32.cont [13/16] 0.0, 128
        %291 = vxpose.xlu0.b32.cont [14/16] 0.0, 128
        %292 = vxpose.xlu0.b32.cont [15/16] 0.0, 128
        %293 = vxpose.xlu0.b32.end [16/16] 0.0, 128
        %v294 = vpop.trf.xlu0
        %v295 = vpop.trf.xlu0
        %v296 = vpop.trf.xlu0
        %v297 = vpop.trf.xlu0
        %v298 = vpop.trf.xlu0
        %v299 = vpop.trf.xlu0
        %v300 = vpop.trf.xlu0
        %v301 = vpop.trf.xlu0
        %v302 = vpop.trf.xlu0
        %v303 = vpop.trf.xlu0
        %v304 = vpop.trf.xlu0
        %v305 = vpop.trf.xlu0
        %v306 = vpop.trf.xlu0
        %v307 = vpop.trf.xlu0
        %v308 = vpop.trf.xlu0
        %v309 = vpop.trf.xlu0
        %v310 = vld [vmem:[%s2] sm:$0x1]
        %v312 = vperm.slane %v310, 0
        %v314 = vsub.f32 %v294, %v312
        %v315 = vsub.f32 %v295, %v312
        %v316 = vsub.f32 %v296, %v312
        %v317 = vsub.f32 %v297, %v312
        %v318 = vsub.f32 %v298, %v312
        %v319 = vsub.f32 %v299, %v312
        %v320 = vsub.f32 %v300, %v312
        %v321 = vsub.f32 %v301, %v312
        %v322 = vsub.f32 %v302, %v312
        %v323 = vsub.f32 %v303, %v312
        %v324 = vsub.f32 %v304, %v312
        %v325 = vsub.f32 %v305, %v312
        %v326 = vsub.f32 %v306, %v312
        %v327 = vsub.f32 %v307, %v312
        %v328 = vsub.f32 %v308, %v312
        %v329 = vsub.f32 %v309, %v312
        %v330 = vmul.f32 %v314, %v314
        %v331 = vmul.f32 %v315, %v315
        %v332 = vmul.f32 %v316, %v316
        %v333 = vmul.f32 %v317, %v317
        %v334 = vmul.f32 %v318, %v318
        %v335 = vmul.f32 %v319, %v319
        %v336 = vmul.f32 %v320, %v320
        %v337 = vmul.f32 %v321, %v321
        %v338 = vmul.f32 %v322, %v322
        %v339 = vmul.f32 %v323, %v323
        %v340 = vmul.f32 %v324, %v324
        %v341 = vmul.f32 %v325, %v325
        %v342 = vmul.f32 %v326, %v326
        %v343 = vmul.f32 %v327, %v327
        %v344 = vmul.f32 %v328, %v328
        %v345 = vmul.f32 %v329, %v329
        %vm346 = vcmask 261120
        %v347 = vsel %vm346, %v330, 0.0
        %348 = vadd.xlane.f32.xlu0 %v347
        %v349 = vpop.xlane.xlu0 %348
        %v350 = vsel %vm346, %v331, 0.0
        %351 = vadd.xlane.f32.xlu0 %v350
        %v352 = vpop.xlane.xlu0 %351
        %v353 = vsel %vm346, %v332, 0.0
        %354 = vadd.xlane.f32.xlu0 %v353
        %v355 = vpop.xlane.xlu0 %354
        %v356 = vsel %vm346, %v333, 0.0
        %357 = vadd.xlane.f32.xlu0 %v356
        %v358 = vpop.xlane.xlu0 %357
        %v359 = vsel %vm346, %v334, 0.0
        %360 = vadd.xlane.f32.xlu0 %v359
        %v361 = vpop.xlane.xlu0 %360
        %v362 = vsel %vm346, %v335, 0.0
        %363 = vadd.xlane.f32.xlu0 %v362
        %v364 = vpop.xlane.xlu0 %363
        %v365 = vsel %vm346, %v336, 0.0
        %366 = vadd.xlane.f32.xlu0 %v365
        %v367 = vpop.xlane.xlu0 %366
        %v368 = vsel %vm346, %v337, 0.0
        %369 = vadd.xlane.f32.xlu0 %v368
        %v370 = vpop.xlane.xlu0 %369
        %v371 = vsel %vm346, %v338, 0.0
        %372 = vadd.xlane.f32.xlu0 %v371
        %v373 = vpop.xlane.xlu0 %372
        %v374 = vsel %vm346, %v339, 0.0
        %375 = vadd.xlane.f32.xlu0 %v374
        %v376 = vpop.xlane.xlu0 %375
        %v377 = vsel %vm346, %v340, 0.0
        %378 = vadd.xlane.f32.xlu0 %v377
        %v379 = vpop.xlane.xlu0 %378
        %v380 = vsel %vm346, %v341, 0.0
        %381 = vadd.xlane.f32.xlu0 %v380
        %v382 = vpop.xlane.xlu0 %381
        %v383 = vsel %vm346, %v342, 0.0
        %384 = vadd.xlane.f32.xlu0 %v383
        %v385 = vpop.xlane.xlu0 %384
        %v386 = vsel %vm346, %v343, 0.0
        %387 = vadd.xlane.f32.xlu0 %v386
        %v388 = vpop.xlane.xlu0 %387
        %v389 = vsel %vm346, %v344, 0.0
        %390 = vadd.xlane.f32.xlu0 %v389
        %v391 = vpop.xlane.xlu0 %390
        %v392 = vsel %vm346, %v345, 0.0
        %393 = vadd.xlane.f32.xlu0 %v392
        %v394 = vpop.xlane.xlu0 %393
        %v395 = vmax.f32 %v349, 1e-24
        %v396 = vmax.f32 %v352, 1e-24
        %v397 = vmax.f32 %v355, 1e-24
        %v398 = vmax.f32 %v358, 1e-24
        %v399 = vmax.f32 %v361, 1e-24
        %v400 = vmax.f32 %v364, 1e-24
        %v401 = vmax.f32 %v367, 1e-24
        %v402 = vmax.f32 %v370, 1e-24
        %v403 = vmax.f32 %v373, 1e-24
        %v404 = vmax.f32 %v376, 1e-24
        %v405 = vmax.f32 %v379, 1e-24
        %v406 = vmax.f32 %v382, 1e-24
        %v407 = vmax.f32 %v385, 1e-24
        %v408 = vmax.f32 %v388, 1e-24
        %v409 = vmax.f32 %v391, 1e-24
        %v410 = vmax.f32 %v394, 1e-24
        %v411 = vrsqrt.pop %v395
        %v412 = vmul.f32 %v411, %v395
        %v413 = vmul.f32 %v412, %v411
        %v414 = vmul.f32 0.5, %v413
        %v415 = vsub.f32 1.5, %v414
        %v416 = vmul.f32 %v411, %v415
        %vm417 = vweird.f32 %v395
        %vm418 = vweird.f32 %v411
        %vm419 = vmor %vm417, %vm418
        %v420 = vsel %vm419, %v411, %v416
        %v421 = vrsqrt.pop %v396
        %v422 = vmul.f32 %v421, %v396
        %v423 = vmul.f32 %v422, %v421
        %v424 = vmul.f32 0.5, %v423
        %v425 = vsub.f32 1.5, %v424
        %v426 = vmul.f32 %v421, %v425
        %vm427 = vweird.f32 %v396
        %vm428 = vweird.f32 %v421
        %vm429 = vmor %vm427, %vm428
        %v430 = vsel %vm429, %v421, %v426
        %v431 = vrsqrt.pop %v397
        %v432 = vmul.f32 %v431, %v397
        %v433 = vmul.f32 %v432, %v431
        %v434 = vmul.f32 0.5, %v433
        %v435 = vsub.f32 1.5, %v434
        %v436 = vmul.f32 %v431, %v435
        %vm437 = vweird.f32 %v397
        %vm438 = vweird.f32 %v431
        %vm439 = vmor %vm437, %vm438
        %v440 = vsel %vm439, %v431, %v436
        %v441 = vrsqrt.pop %v398
        %v442 = vmul.f32 %v441, %v398
        %v443 = vmul.f32 %v442, %v441
        %v444 = vmul.f32 0.5, %v443
        %v445 = vsub.f32 1.5, %v444
        %v446 = vmul.f32 %v441, %v445
        %vm447 = vweird.f32 %v398
        %vm448 = vweird.f32 %v441
        %vm449 = vmor %vm447, %vm448
        %v450 = vsel %vm449, %v441, %v446
        %v451 = vrsqrt.pop %v399
        %v452 = vmul.f32 %v451, %v399
        %v453 = vmul.f32 %v452, %v451
        %v454 = vmul.f32 0.5, %v453
        %v455 = vsub.f32 1.5, %v454
        %v456 = vmul.f32 %v451, %v455
        %vm457 = vweird.f32 %v399
        %vm458 = vweird.f32 %v451
        %vm459 = vmor %vm457, %vm458
        %v460 = vsel %vm459, %v451, %v456
        %v461 = vrsqrt.pop %v400
        %v462 = vmul.f32 %v461, %v400
        %v463 = vmul.f32 %v462, %v461
        %v464 = vmul.f32 0.5, %v463
        %v465 = vsub.f32 1.5, %v464
        %v466 = vmul.f32 %v461, %v465
        %vm467 = vweird.f32 %v400
        %vm468 = vweird.f32 %v461
        %vm469 = vmor %vm467, %vm468
        %v470 = vsel %vm469, %v461, %v466
        %v471 = vrsqrt.pop %v401
        %v472 = vmul.f32 %v471, %v401
        %v473 = vmul.f32 %v472, %v471
        %v474 = vmul.f32 0.5, %v473
        %v475 = vsub.f32 1.5, %v474
        %v476 = vmul.f32 %v471, %v475
        %vm477 = vweird.f32 %v401
        %vm478 = vweird.f32 %v471
        %vm479 = vmor %vm477, %vm478
        %v480 = vsel %vm479, %v471, %v476
        %v481 = vrsqrt.pop %v402
        %v482 = vmul.f32 %v481, %v402
        %v483 = vmul.f32 %v482, %v481
        %v484 = vmul.f32 0.5, %v483
        %v485 = vsub.f32 1.5, %v484
        %v486 = vmul.f32 %v481, %v485
        %vm487 = vweird.f32 %v402
        %vm488 = vweird.f32 %v481
        %vm489 = vmor %vm487, %vm488
        %v490 = vsel %vm489, %v481, %v486
        %v491 = vrsqrt.pop %v403
        %v492 = vmul.f32 %v491, %v403
        %v493 = vmul.f32 %v492, %v491
        %v494 = vmul.f32 0.5, %v493
        %v495 = vsub.f32 1.5, %v494
        %v496 = vmul.f32 %v491, %v495
        %vm497 = vweird.f32 %v403
        %vm498 = vweird.f32 %v491
        %vm499 = vmor %vm497, %vm498
        %v500 = vsel %vm499, %v491, %v496
        %v501 = vrsqrt.pop %v404
        %v502 = vmul.f32 %v501, %v404
        %v503 = vmul.f32 %v502, %v501
        %v504 = vmul.f32 0.5, %v503
        %v505 = vsub.f32 1.5, %v504
        %v506 = vmul.f32 %v501, %v505
        %vm507 = vweird.f32 %v404
        %vm508 = vweird.f32 %v501
        %vm509 = vmor %vm507, %vm508
        %v510 = vsel %vm509, %v501, %v506
        %v511 = vrsqrt.pop %v405
        %v512 = vmul.f32 %v511, %v405
        %v513 = vmul.f32 %v512, %v511
        %v514 = vmul.f32 0.5, %v513
        %v515 = vsub.f32 1.5, %v514
        %v516 = vmul.f32 %v511, %v515
        %vm517 = vweird.f32 %v405
        %vm518 = vweird.f32 %v511
        %vm519 = vmor %vm517, %vm518
        %v520 = vsel %vm519, %v511, %v516
        %v521 = vrsqrt.pop %v406
        %v522 = vmul.f32 %v521, %v406
        %v523 = vmul.f32 %v522, %v521
        %v524 = vmul.f32 0.5, %v523
        %v525 = vsub.f32 1.5, %v524
        %v526 = vmul.f32 %v521, %v525
        %vm527 = vweird.f32 %v406
        %vm528 = vweird.f32 %v521
        %vm529 = vmor %vm527, %vm528
        %v530 = vsel %vm529, %v521, %v526
        %v531 = vrsqrt.pop %v407
        %v532 = vmul.f32 %v531, %v407
        %v533 = vmul.f32 %v532, %v531
        %v534 = vmul.f32 0.5, %v533
        %v535 = vsub.f32 1.5, %v534
        %v536 = vmul.f32 %v531, %v535
        %vm537 = vweird.f32 %v407
        %vm538 = vweird.f32 %v531
        %vm539 = vmor %vm537, %vm538
        %v540 = vsel %vm539, %v531, %v536
        %v541 = vrsqrt.pop %v408
        %v542 = vmul.f32 %v541, %v408
        %v543 = vmul.f32 %v542, %v541
        %v544 = vmul.f32 0.5, %v543
        %v545 = vsub.f32 1.5, %v544
        %v546 = vmul.f32 %v541, %v545
        %vm547 = vweird.f32 %v408
        %vm548 = vweird.f32 %v541
        %vm549 = vmor %vm547, %vm548
        %v550 = vsel %vm549, %v541, %v546
        %v551 = vrsqrt.pop %v409
        %v552 = vmul.f32 %v551, %v409
        %v553 = vmul.f32 %v552, %v551
        %v554 = vmul.f32 0.5, %v553
        %v555 = vsub.f32 1.5, %v554
        %v556 = vmul.f32 %v551, %v555
        %vm557 = vweird.f32 %v409
        %vm558 = vweird.f32 %v551
        %vm559 = vmor %vm557, %vm558
        %v560 = vsel %vm559, %v551, %v556
        %v561 = vrsqrt.pop %v410
        %v562 = vmul.f32 %v561, %v410
        %v563 = vmul.f32 %v562, %v561
        %v564 = vmul.f32 0.5, %v563
        %v565 = vsub.f32 1.5, %v564
        %v566 = vmul.f32 %v561, %v565
        %vm567 = vweird.f32 %v410
        %vm568 = vweird.f32 %v561
        %vm569 = vmor %vm567, %vm568
        %v570 = vsel %vm569, %v561, %v566
        %v571 = vmul.f32 %v314, %v420
        %v572 = vmul.f32 %v315, %v430
        %v573 = vmul.f32 %v316, %v440
        %v574 = vmul.f32 %v317, %v450
        %v575 = vmul.f32 %v318, %v460
        %v576 = vmul.f32 %v319, %v470
        %v577 = vmul.f32 %v320, %v480
        %v578 = vmul.f32 %v321, %v490
        %v579 = vmul.f32 %v322, %v500
        %v580 = vmul.f32 %v323, %v510
        %v581 = vmul.f32 %v324, %v520
        %v582 = vmul.f32 %v325, %v530
        %v583 = vmul.f32 %v326, %v540
        %v584 = vmul.f32 %v327, %v550
        %v585 = vmul.f32 %v328, %v560
        %v586 = vmul.f32 %v329, %v570
        %v587 = vpack.c.bf16 %v572, %v571
        %v588 = vpack.c.bf16 %v574, %v573
        %v589 = vpack.c.bf16 %v576, %v575
        %v590 = vpack.c.bf16 %v578, %v577
        %v591 = vpack.c.bf16 %v580, %v579
        %v592 = vpack.c.bf16 %v582, %v581
        %v593 = vpack.c.bf16 %v584, %v583
        %v594 = vpack.c.bf16 %v586, %v585
        %v595 = vld [vmem:[%s234] sm:$0xff]
        %v596 = vld [vmem:[%s234 + $0x8] sm:$0xff]
        %v597 = vld [vmem:[%s234 + $0x10] sm:$0xff]
        %v598 = vld [vmem:[%s234 + $0x18] sm:$0xff]
        %v599 = vld [vmem:[%s234 + $0x20] sm:$0xff]
        %v600 = vld [vmem:[%s234 + $0x28] sm:$0xff]
        %v601 = vld [vmem:[%s234 + $0x30] sm:$0xff]
        %v602 = vld [vmem:[%s234 + $0x38] sm:$0xff]
        %v611 = vunpack.c.l.b16 %v595
        %v612 = vunpack.c.h.b16 %v595
        %v613 = vunpack.c.l.b16 %v596
        %v614 = vunpack.c.h.b16 %v596
        %v615 = vunpack.c.l.b16 %v597
        %v616 = vunpack.c.h.b16 %v597
        %v617 = vunpack.c.l.b16 %v598
        %v618 = vunpack.c.h.b16 %v598
        %v619 = vunpack.c.l.b16 %v599
        %v620 = vunpack.c.h.b16 %v599
        %v621 = vunpack.c.l.b16 %v600
        %v622 = vunpack.c.h.b16 %v600
        %v623 = vunpack.c.l.b16 %v601
        %v624 = vunpack.c.h.b16 %v601
        %v625 = vunpack.c.l.b16 %v602
        %v626 = vunpack.c.h.b16 %v602
        %v627 = vpack.c.b16 %v615, %v611
        %v628 = vpack.c.b16 %v616, %v612
        %v629 = vpack.c.b16 %v617, %v613
        %v630 = vpack.c.b16 %v618, %v614
        %v631 = vpack.c.b16 %v623, %v619
        %v632 = vpack.c.b16 %v624, %v620
        %v633 = vpack.c.b16 %v625, %v621
        %v634 = vpack.c.b16 %v626, %v622
        %v644 = vsel %vm346, %v587, 0
        %v647 = vsel %vm346, %v588, 0
        %v650 = vsel %vm346, %v589, 0
        %v653 = vsel %vm346, %v590, 0
        %v656 = vsel %vm346, %v591, 0
        %v659 = vsel %vm346, %v592, 0
        %v662 = vsel %vm346, %v593, 0
        %v665 = vsel %vm346, %v594, 0
        %667 = vmatpush.bf16.msra.mxu0 0
        %668 = vmatpush.bf16.msra.mxu0 0
        %669 = vmatpush.bf16.msra.mxu0 0
        %670 = vmatpush.bf16.msra.mxu0 0
        %671 = vmatpush.bf16.msra.mxu0 0
        %672 = vmatpush.bf16.msra.mxu0 0
        %673 = vmatpush.bf16.msra.mxu0 %v631
        %674 = vmatpush.bf16.msra.mxu0 %v627
        %675 = vmatmul.bf16.gmra.mxu0 %v644
        %v676 = vpop.f32.mrf.mxu0
        %v677 = vadd.f32 0.0, %v676
        %v678 = vpop.f32.mrf.mxu0
        %v679 = vadd.f32 0.0, %v678
        %680 = vmatmul.bf16.gmra.mxu0 %v647
        %v681 = vpop.f32.mrf.mxu0
        %v682 = vadd.f32 0.0, %v681
        %v683 = vpop.f32.mrf.mxu0
        %v684 = vadd.f32 0.0, %v683
        %685 = vmatmul.bf16.gmra.mxu0 %v650
        %v686 = vpop.f32.mrf.mxu0
        %v687 = vadd.f32 0.0, %v686
        %v688 = vpop.f32.mrf.mxu0
        %v689 = vadd.f32 0.0, %v688
        %690 = vmatmul.bf16.gmra.mxu0 %v653
        %v691 = vpop.f32.mrf.mxu0
        %v692 = vadd.f32 0.0, %v691
        %v693 = vpop.f32.mrf.mxu0
        %v694 = vadd.f32 0.0, %v693
        %695 = vmatmul.bf16.gmra.mxu0 %v656
        %v696 = vpop.f32.mrf.mxu0
        %v697 = vadd.f32 0.0, %v696
        %v698 = vpop.f32.mrf.mxu0
        %v699 = vadd.f32 0.0, %v698
        %700 = vmatmul.bf16.gmra.mxu0 %v659
        %v701 = vpop.f32.mrf.mxu0
        %v702 = vadd.f32 0.0, %v701
        %v703 = vpop.f32.mrf.mxu0
        %v704 = vadd.f32 0.0, %v703
        %705 = vmatmul.bf16.gmra.mxu0 %v662
        %v706 = vpop.f32.mrf.mxu0
        %v707 = vadd.f32 0.0, %v706
        %v708 = vpop.f32.mrf.mxu0
        %v709 = vadd.f32 0.0, %v708
        %710 = vmatmul.bf16.gmra.mxu0 %v665
        %v711 = vpop.f32.mrf.mxu0
        %v712 = vadd.f32 0.0, %v711
        %v713 = vpop.f32.mrf.mxu0
        %v714 = vadd.f32 0.0, %v713
        %715 = vdwg.mxu0
        %716 = vmatpush.bf16.msra.mxu0 0
        %717 = vmatpush.bf16.msra.mxu0 0
        %718 = vmatpush.bf16.msra.mxu0 0
        %719 = vmatpush.bf16.msra.mxu0 0
        %720 = vmatpush.bf16.msra.mxu0 0
        %721 = vmatpush.bf16.msra.mxu0 0
        %722 = vmatpush.bf16.msra.mxu0 %v632
        %723 = vmatpush.bf16.msra.mxu0 %v628
        %724 = vmatmul.bf16.gmra.mxu0 %v644
        %v725 = vpop.f32.mrf.mxu0
        %v726 = vadd.f32 0.0, %v725
        %v727 = vpop.f32.mrf.mxu0
        %v728 = vadd.f32 0.0, %v727
        %729 = vmatmul.bf16.gmra.mxu0 %v647
        %v730 = vpop.f32.mrf.mxu0
        %v731 = vadd.f32 0.0, %v730
        %v732 = vpop.f32.mrf.mxu0
        %v733 = vadd.f32 0.0, %v732
        %734 = vmatmul.bf16.gmra.mxu0 %v650
        %v735 = vpop.f32.mrf.mxu0
        %v736 = vadd.f32 0.0, %v735
        %v737 = vpop.f32.mrf.mxu0
        %v738 = vadd.f32 0.0, %v737
        %739 = vmatmul.bf16.gmra.mxu0 %v653
        %v740 = vpop.f32.mrf.mxu0
        %v741 = vadd.f32 0.0, %v740
        %v742 = vpop.f32.mrf.mxu0
        %v743 = vadd.f32 0.0, %v742
        %744 = vmatmul.bf16.gmra.mxu0 %v656
        %v745 = vpop.f32.mrf.mxu0
        %v746 = vadd.f32 0.0, %v745
        %v747 = vpop.f32.mrf.mxu0
        %v748 = vadd.f32 0.0, %v747
        %749 = vmatmul.bf16.gmra.mxu0 %v659
        %v750 = vpop.f32.mrf.mxu0
        %v751 = vadd.f32 0.0, %v750
        %v752 = vpop.f32.mrf.mxu0
        %v753 = vadd.f32 0.0, %v752
        %754 = vmatmul.bf16.gmra.mxu0 %v662
        %v755 = vpop.f32.mrf.mxu0
        %v756 = vadd.f32 0.0, %v755
        %v757 = vpop.f32.mrf.mxu0
        %v758 = vadd.f32 0.0, %v757
        %759 = vmatmul.bf16.gmra.mxu0 %v665
        %v760 = vpop.f32.mrf.mxu0
        %v761 = vadd.f32 0.0, %v760
        %v762 = vpop.f32.mrf.mxu0
        %v763 = vadd.f32 0.0, %v762
        %764 = vdwg.mxu0
        %765 = vmatpush.bf16.msra.mxu0 0
        %766 = vmatpush.bf16.msra.mxu0 0
        %767 = vmatpush.bf16.msra.mxu0 0
        %768 = vmatpush.bf16.msra.mxu0 0
        %769 = vmatpush.bf16.msra.mxu0 0
        %770 = vmatpush.bf16.msra.mxu0 0
        %771 = vmatpush.bf16.msra.mxu0 %v633
        %772 = vmatpush.bf16.msra.mxu0 %v629
        %773 = vmatmul.bf16.gmra.mxu0 %v644
        %v774 = vpop.f32.mrf.mxu0
        %v775 = vadd.f32 0.0, %v774
        %v776 = vpop.f32.mrf.mxu0
        %v777 = vadd.f32 0.0, %v776
        %778 = vmatmul.bf16.gmra.mxu0 %v647
        %v779 = vpop.f32.mrf.mxu0
        %v780 = vadd.f32 0.0, %v779
        %v781 = vpop.f32.mrf.mxu0
        %v782 = vadd.f32 0.0, %v781
        %783 = vmatmul.bf16.gmra.mxu0 %v650
        %v784 = vpop.f32.mrf.mxu0
        %v785 = vadd.f32 0.0, %v784
        %v786 = vpop.f32.mrf.mxu0
        %v787 = vadd.f32 0.0, %v786
        %788 = vmatmul.bf16.gmra.mxu0 %v653
        %v789 = vpop.f32.mrf.mxu0
        %v790 = vadd.f32 0.0, %v789
        %v791 = vpop.f32.mrf.mxu0
        %v792 = vadd.f32 0.0, %v791
        %793 = vmatmul.bf16.gmra.mxu0 %v656
        %v794 = vpop.f32.mrf.mxu0
        %v795 = vadd.f32 0.0, %v794
        %v796 = vpop.f32.mrf.mxu0
        %v797 = vadd.f32 0.0, %v796
        %798 = vmatmul.bf16.gmra.mxu0 %v659
        %v799 = vpop.f32.mrf.mxu0
        %v800 = vadd.f32 0.0, %v799
        %v801 = vpop.f32.mrf.mxu0
        %v802 = vadd.f32 0.0, %v801
        %803 = vmatmul.bf16.gmra.mxu0 %v662
        %v804 = vpop.f32.mrf.mxu0
        %v805 = vadd.f32 0.0, %v804
        %v806 = vpop.f32.mrf.mxu0
        %v807 = vadd.f32 0.0, %v806
        %808 = vmatmul.bf16.gmra.mxu0 %v665
        %v809 = vpop.f32.mrf.mxu0
        %v810 = vadd.f32 0.0, %v809
        %v811 = vpop.f32.mrf.mxu0
        %v812 = vadd.f32 0.0, %v811
        %813 = vdwg.mxu0
        %814 = vmatpush.bf16.msra.mxu0 0
        %815 = vmatpush.bf16.msra.mxu0 0
        %816 = vmatpush.bf16.msra.mxu0 0
        %817 = vmatpush.bf16.msra.mxu0 0
        %818 = vmatpush.bf16.msra.mxu0 0
        %819 = vmatpush.bf16.msra.mxu0 0
        %820 = vmatpush.bf16.msra.mxu0 %v634
        %821 = vmatpush.bf16.msra.mxu0 %v630
        %822 = vmatmul.bf16.gmra.mxu0 %v644
        %v823 = vpop.f32.mrf.mxu0
        %v824 = vadd.f32 0.0, %v823
        %v825 = vpop.f32.mrf.mxu0
        %v826 = vadd.f32 0.0, %v825
        %827 = vmatmul.bf16.gmra.mxu0 %v647
        %v828 = vpop.f32.mrf.mxu0
        %v829 = vadd.f32 0.0, %v828
        %v830 = vpop.f32.mrf.mxu0
        %v831 = vadd.f32 0.0, %v830
        %832 = vmatmul.bf16.gmra.mxu0 %v650
        %v833 = vpop.f32.mrf.mxu0
        %v834 = vadd.f32 0.0, %v833
        %v835 = vpop.f32.mrf.mxu0
        %v836 = vadd.f32 0.0, %v835
        %837 = vmatmul.bf16.gmra.mxu0 %v653
        %v838 = vpop.f32.mrf.mxu0
        %v839 = vadd.f32 0.0, %v838
        %v840 = vpop.f32.mrf.mxu0
        %v841 = vadd.f32 0.0, %v840
        %842 = vmatmul.bf16.gmra.mxu0 %v656
        %v843 = vpop.f32.mrf.mxu0
        %v844 = vadd.f32 0.0, %v843
        %v845 = vpop.f32.mrf.mxu0
        %v846 = vadd.f32 0.0, %v845
        %847 = vmatmul.bf16.gmra.mxu0 %v659
        %v848 = vpop.f32.mrf.mxu0
        %v849 = vadd.f32 0.0, %v848
        %v850 = vpop.f32.mrf.mxu0
        %v851 = vadd.f32 0.0, %v850
        %852 = vmatmul.bf16.gmra.mxu0 %v662
        %v853 = vpop.f32.mrf.mxu0
        %v854 = vadd.f32 0.0, %v853
        %v855 = vpop.f32.mrf.mxu0
        %v856 = vadd.f32 0.0, %v855
        %857 = vmatmul.bf16.gmra.mxu0 %v665
        %v858 = vpop.f32.mrf.mxu0
        %v859 = vadd.f32 0.0, %v858
        %v860 = vpop.f32.mrf.mxu0
        %v861 = vadd.f32 0.0, %v860
        %862 = vdwg.mxu0
        %v863 = vmax.f32 %v677, %v726
        %v864 = vmax.f32 %v863, %v775
        %v865 = vmax.f32 %v864, %v824
        %866 = vmax.xlane.f32.xlu0 %v865
        %v867 = vpop.xlane.xlu0 %866
        %v868 = vmax.f32 %v679, %v728
        %v869 = vmax.f32 %v868, %v777
        %v870 = vmax.f32 %v869, %v826
        %871 = vmax.xlane.f32.xlu0 %v870
        %v872 = vpop.xlane.xlu0 %871
        %v873 = vmax.f32 %v682, %v731
        %v874 = vmax.f32 %v873, %v780
        %v875 = vmax.f32 %v874, %v829
        %876 = vmax.xlane.f32.xlu0 %v875
        %v877 = vpop.xlane.xlu0 %876
        %v878 = vmax.f32 %v684, %v733
        %v879 = vmax.f32 %v878, %v782
        %v880 = vmax.f32 %v879, %v831
        %881 = vmax.xlane.f32.xlu0 %v880
        %v882 = vpop.xlane.xlu0 %881
        %v883 = vmax.f32 %v687, %v736
        %v884 = vmax.f32 %v883, %v785
        %v885 = vmax.f32 %v884, %v834
        %886 = vmax.xlane.f32.xlu0 %v885
        %v887 = vpop.xlane.xlu0 %886
        %v888 = vmax.f32 %v689, %v738
        %v889 = vmax.f32 %v888, %v787
        %v890 = vmax.f32 %v889, %v836
        %891 = vmax.xlane.f32.xlu0 %v890
        %v892 = vpop.xlane.xlu0 %891
        %v893 = vmax.f32 %v692, %v741
        %v894 = vmax.f32 %v893, %v790
        %v895 = vmax.f32 %v894, %v839
        %896 = vmax.xlane.f32.xlu0 %v895
        %v897 = vpop.xlane.xlu0 %896
        %v898 = vmax.f32 %v694, %v743
        %v899 = vmax.f32 %v898, %v792
        %v900 = vmax.f32 %v899, %v841
        %901 = vmax.xlane.f32.xlu0 %v900
        %v902 = vpop.xlane.xlu0 %901
        %v903 = vmax.f32 %v697, %v746
        %v904 = vmax.f32 %v903, %v795
        %v905 = vmax.f32 %v904, %v844
        %906 = vmax.xlane.f32.xlu0 %v905
        %v907 = vpop.xlane.xlu0 %906
        %v908 = vmax.f32 %v699, %v748
        %v909 = vmax.f32 %v908, %v797
        %v910 = vmax.f32 %v909, %v846
        %911 = vmax.xlane.f32.xlu0 %v910
        %v912 = vpop.xlane.xlu0 %911
        %v913 = vmax.f32 %v702, %v751
        %v914 = vmax.f32 %v913, %v800
        %v915 = vmax.f32 %v914, %v849
        %916 = vmax.xlane.f32.xlu0 %v915
        %v917 = vpop.xlane.xlu0 %916
        %v918 = vmax.f32 %v704, %v753
        %v919 = vmax.f32 %v918, %v802
        %v920 = vmax.f32 %v919, %v851
        %921 = vmax.xlane.f32.xlu0 %v920
        %v922 = vpop.xlane.xlu0 %921
        %v923 = vmax.f32 %v707, %v756
        %v924 = vmax.f32 %v923, %v805
        %v925 = vmax.f32 %v924, %v854
        %926 = vmax.xlane.f32.xlu0 %v925
        %v927 = vpop.xlane.xlu0 %926
        %v928 = vmax.f32 %v709, %v758
        %v929 = vmax.f32 %v928, %v807
        %v930 = vmax.f32 %v929, %v856
        %931 = vmax.xlane.f32.xlu0 %v930
        %v932 = vpop.xlane.xlu0 %931
        %v933 = vmax.f32 %v712, %v761
        %v934 = vmax.f32 %v933, %v810
        %v935 = vmax.f32 %v934, %v859
        %936 = vmax.xlane.f32.xlu0 %v935
        %v937 = vpop.xlane.xlu0 %936
        %v938 = vmax.f32 %v714, %v763
        %v939 = vmax.f32 %v938, %v812
        %v940 = vmax.f32 %v939, %v861
        %941 = vmax.xlane.f32.xlu0 %v940
        %v942 = vpop.xlane.xlu0 %941
        %v943 = vsub.f32 1.0, %v867
        %v944 = vsub.f32 1.0, %v872
        %v945 = vsub.f32 1.0, %v877
        %v946 = vsub.f32 1.0, %v882
        %v947 = vsub.f32 1.0, %v887
        %v948 = vsub.f32 1.0, %v892
        %v949 = vsub.f32 1.0, %v897
        %v950 = vsub.f32 1.0, %v902
        %v951 = vsub.f32 1.0, %v907
        %v952 = vsub.f32 1.0, %v912
        %v953 = vsub.f32 1.0, %v917
        %v954 = vsub.f32 1.0, %v922
        %v955 = vsub.f32 1.0, %v927
        %v956 = vsub.f32 1.0, %v932
        %v957 = vsub.f32 1.0, %v937
        %v958 = vsub.f32 1.0, %v942
        %v959 = vmax.f32 %v943, 0.0
        %v960 = vmax.f32 %v944, 0.0
        %v961 = vmax.f32 %v945, 0.0
        %v962 = vmax.f32 %v946, 0.0
        %v963 = vmax.f32 %v947, 0.0
        %v964 = vmax.f32 %v948, 0.0
        %v965 = vmax.f32 %v949, 0.0
        %v966 = vmax.f32 %v950, 0.0
        %v967 = vmax.f32 %v951, 0.0
        %v968 = vmax.f32 %v952, 0.0
        %v969 = vmax.f32 %v953, 0.0
        %v970 = vmax.f32 %v954, 0.0
        %v971 = vmax.f32 %v955, 0.0
        %v972 = vmax.f32 %v956, 0.0
        %v973 = vmax.f32 %v957, 0.0
        %v974 = vmax.f32 %v958, 0.0
        %v975 = vadd.f32 %v959, 1e-05
        %v976 = vadd.f32 %v960, 1e-05
        %v977 = vadd.f32 %v961, 1e-05
        %v978 = vadd.f32 %v962, 1e-05
        %v979 = vadd.f32 %v963, 1e-05
        %v980 = vadd.f32 %v964, 1e-05
        %v981 = vadd.f32 %v965, 1e-05
        %v982 = vadd.f32 %v966, 1e-05
        %v983 = vadd.f32 %v967, 1e-05
        %v984 = vadd.f32 %v968, 1e-05
        %v985 = vadd.f32 %v969, 1e-05
        %v986 = vadd.f32 %v970, 1e-05
        %v987 = vadd.f32 %v971, 1e-05
        %v988 = vadd.f32 %v972, 1e-05
        %v989 = vadd.f32 %v973, 1e-05
        %v990 = vadd.f32 %v974, 1e-05
        %v991 = vrcp.pop %v975
        %v992 = vmul.f32 %v975, %v991
        %v993 = vsub.f32 1.0, %v992
        %v994 = vmul.f32 %v991, %v993
        %v995 = vadd.f32 %v991, %v994
        %vm996 = vweird.f32 %v975
        %vm997 = vweird.f32 %v991
        %vm998 = vmor %vm996, %vm997
        %v999 = vsel %vm998, %v991, %v995
        %v1000 = vand.u32 2147483647, %v975
        %vm1001 = vcmp.eq.f32.partialorder %v1000, 8.507059e+37
        %v1002 = vand.u32 %v975, 2147483648
        %v1003 = vor.u32 1.1754944e-38, %v1002
        %v1004 = vsel %vm1001, %v1003, %v999
        %v1005 = vmul.f32 -10.0, %v1004
        %v1006 = vrcp.pop %v976
        %v1007 = vmul.f32 %v976, %v1006
        %v1008 = vsub.f32 1.0, %v1007
        %v1009 = vmul.f32 %v1006, %v1008
        %v1010 = vadd.f32 %v1006, %v1009
        %vm1011 = vweird.f32 %v976
        %vm1012 = vweird.f32 %v1006
        %vm1013 = vmor %vm1011, %vm1012
        %v1014 = vsel %vm1013, %v1006, %v1010
        %v1015 = vand.u32 2147483647, %v976
        %vm1016 = vcmp.eq.f32.partialorder %v1015, 8.507059e+37
        %v1017 = vand.u32 %v976, 2147483648
        %v1018 = vor.u32 1.1754944e-38, %v1017
        %v1019 = vsel %vm1016, %v1018, %v1014
        %v1020 = vmul.f32 -10.0, %v1019
        %v1021 = vrcp.pop %v977
        %v1022 = vmul.f32 %v977, %v1021
        %v1023 = vsub.f32 1.0, %v1022
        %v1024 = vmul.f32 %v1021, %v1023
        %v1025 = vadd.f32 %v1021, %v1024
        %vm1026 = vweird.f32 %v977
        %vm1027 = vweird.f32 %v1021
        %vm1028 = vmor %vm1026, %vm1027
        %v1029 = vsel %vm1028, %v1021, %v1025
        %v1030 = vand.u32 2147483647, %v977
        %vm1031 = vcmp.eq.f32.partialorder %v1030, 8.507059e+37
        %v1032 = vand.u32 %v977, 2147483648
        %v1033 = vor.u32 1.1754944e-38, %v1032
        %v1034 = vsel %vm1031, %v1033, %v1029
        %v1035 = vmul.f32 -10.0, %v1034
        %v1036 = vrcp.pop %v978
        %v1037 = vmul.f32 %v978, %v1036
        %v1038 = vsub.f32 1.0, %v1037
        %v1039 = vmul.f32 %v1036, %v1038
        %v1040 = vadd.f32 %v1036, %v1039
        %vm1041 = vweird.f32 %v978
        %vm1042 = vweird.f32 %v1036
        %vm1043 = vmor %vm1041, %vm1042
        %v1044 = vsel %vm1043, %v1036, %v1040
        %v1045 = vand.u32 2147483647, %v978
        %vm1046 = vcmp.eq.f32.partialorder %v1045, 8.507059e+37
        %v1047 = vand.u32 %v978, 2147483648
        %v1048 = vor.u32 1.1754944e-38, %v1047
        %v1049 = vsel %vm1046, %v1048, %v1044
        %v1050 = vmul.f32 -10.0, %v1049
        %v1051 = vrcp.pop %v979
        %v1052 = vmul.f32 %v979, %v1051
        %v1053 = vsub.f32 1.0, %v1052
        %v1054 = vmul.f32 %v1051, %v1053
        %v1055 = vadd.f32 %v1051, %v1054
        %vm1056 = vweird.f32 %v979
        %vm1057 = vweird.f32 %v1051
        %vm1058 = vmor %vm1056, %vm1057
        %v1059 = vsel %vm1058, %v1051, %v1055
        %v1060 = vand.u32 2147483647, %v979
        %vm1061 = vcmp.eq.f32.partialorder %v1060, 8.507059e+37
        %v1062 = vand.u32 %v979, 2147483648
        %v1063 = vor.u32 1.1754944e-38, %v1062
        %v1064 = vsel %vm1061, %v1063, %v1059
        %v1065 = vmul.f32 -10.0, %v1064
        %v1066 = vrcp.pop %v980
        %v1067 = vmul.f32 %v980, %v1066
        %v1068 = vsub.f32 1.0, %v1067
        %v1069 = vmul.f32 %v1066, %v1068
        %v1070 = vadd.f32 %v1066, %v1069
        %vm1071 = vweird.f32 %v980
        %vm1072 = vweird.f32 %v1066
        %vm1073 = vmor %vm1071, %vm1072
        %v1074 = vsel %vm1073, %v1066, %v1070
        %v1075 = vand.u32 2147483647, %v980
        %vm1076 = vcmp.eq.f32.partialorder %v1075, 8.507059e+37
        %v1077 = vand.u32 %v980, 2147483648
        %v1078 = vor.u32 1.1754944e-38, %v1077
        %v1079 = vsel %vm1076, %v1078, %v1074
        %v1080 = vmul.f32 -10.0, %v1079
        %v1081 = vrcp.pop %v981
        %v1082 = vmul.f32 %v981, %v1081
        %v1083 = vsub.f32 1.0, %v1082
        %v1084 = vmul.f32 %v1081, %v1083
        %v1085 = vadd.f32 %v1081, %v1084
        %vm1086 = vweird.f32 %v981
        %vm1087 = vweird.f32 %v1081
        %vm1088 = vmor %vm1086, %vm1087
        %v1089 = vsel %vm1088, %v1081, %v1085
        %v1090 = vand.u32 2147483647, %v981
        %vm1091 = vcmp.eq.f32.partialorder %v1090, 8.507059e+37
        %v1092 = vand.u32 %v981, 2147483648
        %v1093 = vor.u32 1.1754944e-38, %v1092
        %v1094 = vsel %vm1091, %v1093, %v1089
        %v1095 = vmul.f32 -10.0, %v1094
        %v1096 = vrcp.pop %v982
        %v1097 = vmul.f32 %v982, %v1096
        %v1098 = vsub.f32 1.0, %v1097
        %v1099 = vmul.f32 %v1096, %v1098
        %v1100 = vadd.f32 %v1096, %v1099
        %vm1101 = vweird.f32 %v982
        %vm1102 = vweird.f32 %v1096
        %vm1103 = vmor %vm1101, %vm1102
        %v1104 = vsel %vm1103, %v1096, %v1100
        %v1105 = vand.u32 2147483647, %v982
        %vm1106 = vcmp.eq.f32.partialorder %v1105, 8.507059e+37
        %v1107 = vand.u32 %v982, 2147483648
        %v1108 = vor.u32 1.1754944e-38, %v1107
        %v1109 = vsel %vm1106, %v1108, %v1104
        %v1110 = vmul.f32 -10.0, %v1109
        %v1111 = vrcp.pop %v983
        %v1112 = vmul.f32 %v983, %v1111
        %v1113 = vsub.f32 1.0, %v1112
        %v1114 = vmul.f32 %v1111, %v1113
        %v1115 = vadd.f32 %v1111, %v1114
        %vm1116 = vweird.f32 %v983
        %vm1117 = vweird.f32 %v1111
        %vm1118 = vmor %vm1116, %vm1117
        %v1119 = vsel %vm1118, %v1111, %v1115
        %v1120 = vand.u32 2147483647, %v983
        %vm1121 = vcmp.eq.f32.partialorder %v1120, 8.507059e+37
        %v1122 = vand.u32 %v983, 2147483648
        %v1123 = vor.u32 1.1754944e-38, %v1122
        %v1124 = vsel %vm1121, %v1123, %v1119
        %v1125 = vmul.f32 -10.0, %v1124
        %v1126 = vrcp.pop %v984
        %v1127 = vmul.f32 %v984, %v1126
        %v1128 = vsub.f32 1.0, %v1127
        %v1129 = vmul.f32 %v1126, %v1128
        %v1130 = vadd.f32 %v1126, %v1129
        %vm1131 = vweird.f32 %v984
        %vm1132 = vweird.f32 %v1126
        %vm1133 = vmor %vm1131, %vm1132
        %v1134 = vsel %vm1133, %v1126, %v1130
        %v1135 = vand.u32 2147483647, %v984
        %vm1136 = vcmp.eq.f32.partialorder %v1135, 8.507059e+37
        %v1137 = vand.u32 %v984, 2147483648
        %v1138 = vor.u32 1.1754944e-38, %v1137
        %v1139 = vsel %vm1136, %v1138, %v1134
        %v1140 = vmul.f32 -10.0, %v1139
        %v1141 = vrcp.pop %v985
        %v1142 = vmul.f32 %v985, %v1141
        %v1143 = vsub.f32 1.0, %v1142
        %v1144 = vmul.f32 %v1141, %v1143
        %v1145 = vadd.f32 %v1141, %v1144
        %vm1146 = vweird.f32 %v985
        %vm1147 = vweird.f32 %v1141
        %vm1148 = vmor %vm1146, %vm1147
        %v1149 = vsel %vm1148, %v1141, %v1145
        %v1150 = vand.u32 2147483647, %v985
        %vm1151 = vcmp.eq.f32.partialorder %v1150, 8.507059e+37
        %v1152 = vand.u32 %v985, 2147483648
        %v1153 = vor.u32 1.1754944e-38, %v1152
        %v1154 = vsel %vm1151, %v1153, %v1149
        %v1155 = vmul.f32 -10.0, %v1154
        %v1156 = vrcp.pop %v986
        %v1157 = vmul.f32 %v986, %v1156
        %v1158 = vsub.f32 1.0, %v1157
        %v1159 = vmul.f32 %v1156, %v1158
        %v1160 = vadd.f32 %v1156, %v1159
        %vm1161 = vweird.f32 %v986
        %vm1162 = vweird.f32 %v1156
        %vm1163 = vmor %vm1161, %vm1162
        %v1164 = vsel %vm1163, %v1156, %v1160
        %v1165 = vand.u32 2147483647, %v986
        %vm1166 = vcmp.eq.f32.partialorder %v1165, 8.507059e+37
        %v1167 = vand.u32 %v986, 2147483648
        %v1168 = vor.u32 1.1754944e-38, %v1167
        %v1169 = vsel %vm1166, %v1168, %v1164
        %v1170 = vmul.f32 -10.0, %v1169
        %v1171 = vrcp.pop %v987
        %v1172 = vmul.f32 %v987, %v1171
        %v1173 = vsub.f32 1.0, %v1172
        %v1174 = vmul.f32 %v1171, %v1173
        %v1175 = vadd.f32 %v1171, %v1174
        %vm1176 = vweird.f32 %v987
        %vm1177 = vweird.f32 %v1171
        %vm1178 = vmor %vm1176, %vm1177
        %v1179 = vsel %vm1178, %v1171, %v1175
        %v1180 = vand.u32 2147483647, %v987
        %vm1181 = vcmp.eq.f32.partialorder %v1180, 8.507059e+37
        %v1182 = vand.u32 %v987, 2147483648
        %v1183 = vor.u32 1.1754944e-38, %v1182
        %v1184 = vsel %vm1181, %v1183, %v1179
        %v1185 = vmul.f32 -10.0, %v1184
        %v1186 = vrcp.pop %v988
        %v1187 = vmul.f32 %v988, %v1186
        %v1188 = vsub.f32 1.0, %v1187
        %v1189 = vmul.f32 %v1186, %v1188
        %v1190 = vadd.f32 %v1186, %v1189
        %vm1191 = vweird.f32 %v988
        %vm1192 = vweird.f32 %v1186
        %vm1193 = vmor %vm1191, %vm1192
        %v1194 = vsel %vm1193, %v1186, %v1190
        %v1195 = vand.u32 2147483647, %v988
        %vm1196 = vcmp.eq.f32.partialorder %v1195, 8.507059e+37
        %v1197 = vand.u32 %v988, 2147483648
        %v1198 = vor.u32 1.1754944e-38, %v1197
        %v1199 = vsel %vm1196, %v1198, %v1194
        %v1200 = vmul.f32 -10.0, %v1199
        %v1201 = vrcp.pop %v989
        %v1202 = vmul.f32 %v989, %v1201
        %v1203 = vsub.f32 1.0, %v1202
        %v1204 = vmul.f32 %v1201, %v1203
        %v1205 = vadd.f32 %v1201, %v1204
        %vm1206 = vweird.f32 %v989
        %vm1207 = vweird.f32 %v1201
        %vm1208 = vmor %vm1206, %vm1207
        %v1209 = vsel %vm1208, %v1201, %v1205
        %v1210 = vand.u32 2147483647, %v989
        %vm1211 = vcmp.eq.f32.partialorder %v1210, 8.507059e+37
        %v1212 = vand.u32 %v989, 2147483648
        %v1213 = vor.u32 1.1754944e-38, %v1212
        %v1214 = vsel %vm1211, %v1213, %v1209
        %v1215 = vmul.f32 -10.0, %v1214
        %v1216 = vrcp.pop %v990
        %v1217 = vmul.f32 %v990, %v1216
        %v1218 = vsub.f32 1.0, %v1217
        %v1219 = vmul.f32 %v1216, %v1218
        %v1220 = vadd.f32 %v1216, %v1219
        %vm1221 = vweird.f32 %v990
        %vm1222 = vweird.f32 %v1216
        %vm1223 = vmor %vm1221, %vm1222
        %v1224 = vsel %vm1223, %v1216, %v1220
        %v1225 = vand.u32 2147483647, %v990
        %vm1226 = vcmp.eq.f32.partialorder %v1225, 8.507059e+37
        %v1227 = vand.u32 %v990, 2147483648
        %v1228 = vor.u32 1.1754944e-38, %v1227
        %v1229 = vsel %vm1226, %v1228, %v1224
        %v1230 = vmul.f32 -10.0, %v1229
        %v1231 = vsub.f32 1.0, %v677
        %v1232 = vsub.f32 1.0, %v726
        %v1233 = vsub.f32 1.0, %v775
        %v1234 = vsub.f32 1.0, %v824
        %v1235 = vsub.f32 1.0, %v679
        %v1236 = vsub.f32 1.0, %v728
        %v1237 = vsub.f32 1.0, %v777
        %v1238 = vsub.f32 1.0, %v826
        %v1239 = vsub.f32 1.0, %v682
        %v1240 = vsub.f32 1.0, %v731
        %v1241 = vsub.f32 1.0, %v780
        %v1242 = vsub.f32 1.0, %v829
        %v1243 = vsub.f32 1.0, %v684
        %v1244 = vsub.f32 1.0, %v733
        %v1245 = vsub.f32 1.0, %v782
        %v1246 = vsub.f32 1.0, %v831
        %v1247 = vsub.f32 1.0, %v687
        %v1248 = vsub.f32 1.0, %v736
        %v1249 = vsub.f32 1.0, %v785
        %v1250 = vsub.f32 1.0, %v834
        %v1251 = vsub.f32 1.0, %v689
        %v1252 = vsub.f32 1.0, %v738
        %v1253 = vsub.f32 1.0, %v787
        %v1254 = vsub.f32 1.0, %v836
        %v1255 = vsub.f32 1.0, %v692
        %v1256 = vsub.f32 1.0, %v741
        %v1257 = vsub.f32 1.0, %v790
        %v1258 = vsub.f32 1.0, %v839
        %v1259 = vsub.f32 1.0, %v694
        %v1260 = vsub.f32 1.0, %v743
        %v1261 = vsub.f32 1.0, %v792
        %v1262 = vsub.f32 1.0, %v841
        %v1263 = vsub.f32 1.0, %v697
        %v1264 = vsub.f32 1.0, %v746
        %v1265 = vsub.f32 1.0, %v795
        %v1266 = vsub.f32 1.0, %v844
        %v1267 = vsub.f32 1.0, %v699
        %v1268 = vsub.f32 1.0, %v748
        %v1269 = vsub.f32 1.0, %v797
        %v1270 = vsub.f32 1.0, %v846
        %v1271 = vsub.f32 1.0, %v702
        %v1272 = vsub.f32 1.0, %v751
        %v1273 = vsub.f32 1.0, %v800
        %v1274 = vsub.f32 1.0, %v849
        %v1275 = vsub.f32 1.0, %v704
        %v1276 = vsub.f32 1.0, %v753
        %v1277 = vsub.f32 1.0, %v802
        %v1278 = vsub.f32 1.0, %v851
        %v1279 = vsub.f32 1.0, %v707
        %v1280 = vsub.f32 1.0, %v756
        %v1281 = vsub.f32 1.0, %v805
        %v1282 = vsub.f32 1.0, %v854
        %v1283 = vsub.f32 1.0, %v709
        %v1284 = vsub.f32 1.0, %v758
        %v1285 = vsub.f32 1.0, %v807
        %v1286 = vsub.f32 1.0, %v856
        %v1287 = vsub.f32 1.0, %v712
        %v1288 = vsub.f32 1.0, %v761
        %v1289 = vsub.f32 1.0, %v810
        %v1290 = vsub.f32 1.0, %v859
        %v1291 = vsub.f32 1.0, %v714
        %v1292 = vsub.f32 1.0, %v763
        %v1293 = vsub.f32 1.0, %v812
        %v1294 = vsub.f32 1.0, %v861
        %v1295 = vmax.f32 %v1231, 0.0
        %v1296 = vmax.f32 %v1232, 0.0
        %v1297 = vmax.f32 %v1233, 0.0
        %v1298 = vmax.f32 %v1234, 0.0
        %v1299 = vmax.f32 %v1235, 0.0
        %v1300 = vmax.f32 %v1236, 0.0
        %v1301 = vmax.f32 %v1237, 0.0
        %v1302 = vmax.f32 %v1238, 0.0
        %v1303 = vmax.f32 %v1239, 0.0
        %v1304 = vmax.f32 %v1240, 0.0
        %v1305 = vmax.f32 %v1241, 0.0
        %v1306 = vmax.f32 %v1242, 0.0
        %v1307 = vmax.f32 %v1243, 0.0
        %v1308 = vmax.f32 %v1244, 0.0
        %v1309 = vmax.f32 %v1245, 0.0
        %v1310 = vmax.f32 %v1246, 0.0
        %v1311 = vmax.f32 %v1247, 0.0
        %v1312 = vmax.f32 %v1248, 0.0
        %v1313 = vmax.f32 %v1249, 0.0
        %v1314 = vmax.f32 %v1250, 0.0
        %v1315 = vmax.f32 %v1251, 0.0
        %v1316 = vmax.f32 %v1252, 0.0
        %v1317 = vmax.f32 %v1253, 0.0
        %v1318 = vmax.f32 %v1254, 0.0
        %v1319 = vmax.f32 %v1255, 0.0
        %v1320 = vmax.f32 %v1256, 0.0
        %v1321 = vmax.f32 %v1257, 0.0
        %v1322 = vmax.f32 %v1258, 0.0
        %v1323 = vmax.f32 %v1259, 0.0
        %v1324 = vmax.f32 %v1260, 0.0
        %v1325 = vmax.f32 %v1261, 0.0
        %v1326 = vmax.f32 %v1262, 0.0
        %v1327 = vmax.f32 %v1263, 0.0
        %v1328 = vmax.f32 %v1264, 0.0
        %v1329 = vmax.f32 %v1265, 0.0
        %v1330 = vmax.f32 %v1266, 0.0
        %v1331 = vmax.f32 %v1267, 0.0
        %v1332 = vmax.f32 %v1268, 0.0
        %v1333 = vmax.f32 %v1269, 0.0
        %v1334 = vmax.f32 %v1270, 0.0
        %v1335 = vmax.f32 %v1271, 0.0
        %v1336 = vmax.f32 %v1272, 0.0
        %v1337 = vmax.f32 %v1273, 0.0
        %v1338 = vmax.f32 %v1274, 0.0
        %v1339 = vmax.f32 %v1275, 0.0
        %v1340 = vmax.f32 %v1276, 0.0
        %v1341 = vmax.f32 %v1277, 0.0
        %v1342 = vmax.f32 %v1278, 0.0
        %v1343 = vmax.f32 %v1279, 0.0
        %v1344 = vmax.f32 %v1280, 0.0
        %v1345 = vmax.f32 %v1281, 0.0
        %v1346 = vmax.f32 %v1282, 0.0
        %v1347 = vmax.f32 %v1283, 0.0
        %v1348 = vmax.f32 %v1284, 0.0
        %v1349 = vmax.f32 %v1285, 0.0
        %v1350 = vmax.f32 %v1286, 0.0
        %v1351 = vmax.f32 %v1287, 0.0
        %v1352 = vmax.f32 %v1288, 0.0
        %v1353 = vmax.f32 %v1289, 0.0
        %v1354 = vmax.f32 %v1290, 0.0
        %v1355 = vmax.f32 %v1291, 0.0
        %v1356 = vmax.f32 %v1292, 0.0
        %v1357 = vmax.f32 %v1293, 0.0
        %v1358 = vmax.f32 %v1294, 0.0
        %v1359 = vmul.f32 %v1295, %v1005
        %v1360 = vmul.f32 %v1296, %v1005
        %v1361 = vmul.f32 %v1297, %v1005
        %v1362 = vmul.f32 %v1298, %v1005
        %v1363 = vmul.f32 %v1299, %v1020
        %v1364 = vmul.f32 %v1300, %v1020
        %v1365 = vmul.f32 %v1301, %v1020
        %v1366 = vmul.f32 %v1302, %v1020
        %v1367 = vmul.f32 %v1303, %v1035
        %v1368 = vmul.f32 %v1304, %v1035
        %v1369 = vmul.f32 %v1305, %v1035
        %v1370 = vmul.f32 %v1306, %v1035
        %v1371 = vmul.f32 %v1307, %v1050
        %v1372 = vmul.f32 %v1308, %v1050
        %v1373 = vmul.f32 %v1309, %v1050
        %v1374 = vmul.f32 %v1310, %v1050
        %v1375 = vmul.f32 %v1311, %v1065
        %v1376 = vmul.f32 %v1312, %v1065
        %v1377 = vmul.f32 %v1313, %v1065
        %v1378 = vmul.f32 %v1314, %v1065
        %v1379 = vmul.f32 %v1315, %v1080
        %v1380 = vmul.f32 %v1316, %v1080
        %v1381 = vmul.f32 %v1317, %v1080
        %v1382 = vmul.f32 %v1318, %v1080
        %v1383 = vmul.f32 %v1319, %v1095
        %v1384 = vmul.f32 %v1320, %v1095
        %v1385 = vmul.f32 %v1321, %v1095
        %v1386 = vmul.f32 %v1322, %v1095
        %v1387 = vmul.f32 %v1323, %v1110
        %v1388 = vmul.f32 %v1324, %v1110
        %v1389 = vmul.f32 %v1325, %v1110
        %v1390 = vmul.f32 %v1326, %v1110
        %v1391 = vmul.f32 %v1327, %v1125
        %v1392 = vmul.f32 %v1328, %v1125
        %v1393 = vmul.f32 %v1329, %v1125
        %v1394 = vmul.f32 %v1330, %v1125
        %v1395 = vmul.f32 %v1331, %v1140
        %v1396 = vmul.f32 %v1332, %v1140
        %v1397 = vmul.f32 %v1333, %v1140
        %v1398 = vmul.f32 %v1334, %v1140
        %v1399 = vmul.f32 %v1335, %v1155
        %v1400 = vmul.f32 %v1336, %v1155
        %v1401 = vmul.f32 %v1337, %v1155
        %v1402 = vmul.f32 %v1338, %v1155
        %v1403 = vmul.f32 %v1339, %v1170
        %v1404 = vmul.f32 %v1340, %v1170
        %v1405 = vmul.f32 %v1341, %v1170
        %v1406 = vmul.f32 %v1342, %v1170
        %v1407 = vmul.f32 %v1343, %v1185
        %v1408 = vmul.f32 %v1344, %v1185
        %v1409 = vmul.f32 %v1345, %v1185
        %v1410 = vmul.f32 %v1346, %v1185
        %v1411 = vmul.f32 %v1347, %v1200
        %v1412 = vmul.f32 %v1348, %v1200
        %v1413 = vmul.f32 %v1349, %v1200
        %v1414 = vmul.f32 %v1350, %v1200
        %v1415 = vmul.f32 %v1351, %v1215
        %v1416 = vmul.f32 %v1352, %v1215
        %v1417 = vmul.f32 %v1353, %v1215
        %v1418 = vmul.f32 %v1354, %v1215
        %v1419 = vmul.f32 %v1355, %v1230
        %v1420 = vmul.f32 %v1356, %v1230
        %v1421 = vmul.f32 %v1357, %v1230
        %v1422 = vmul.f32 %v1358, %v1230
        %v1423 = vpack.c.bf16 %v1360, %v1359
        %v1424 = vpack.c.bf16 %v1362, %v1361
        %v1425 = vpack.c.bf16 %v1364, %v1363
        %v1426 = vpack.c.bf16 %v1366, %v1365
        %v1427 = vpack.c.bf16 %v1368, %v1367
        %v1428 = vpack.c.bf16 %v1370, %v1369
        %v1429 = vpack.c.bf16 %v1372, %v1371
        %v1430 = vpack.c.bf16 %v1374, %v1373
        %v1431 = vpack.c.bf16 %v1376, %v1375
        %v1432 = vpack.c.bf16 %v1378, %v1377
        %v1433 = vpack.c.bf16 %v1380, %v1379
        %v1434 = vpack.c.bf16 %v1382, %v1381
        %v1435 = vpack.c.bf16 %v1384, %v1383
        %v1436 = vpack.c.bf16 %v1386, %v1385
        %v1437 = vpack.c.bf16 %v1388, %v1387
        %v1438 = vpack.c.bf16 %v1390, %v1389
        %v1439 = vpack.c.bf16 %v1392, %v1391
        %v1440 = vpack.c.bf16 %v1394, %v1393
        %v1441 = vpack.c.bf16 %v1396, %v1395
        %v1442 = vpack.c.bf16 %v1398, %v1397
        %v1443 = vpack.c.bf16 %v1400, %v1399
        %v1444 = vpack.c.bf16 %v1402, %v1401
        %v1445 = vpack.c.bf16 %v1404, %v1403
        %v1446 = vpack.c.bf16 %v1406, %v1405
        %v1447 = vpack.c.bf16 %v1408, %v1407
        %v1448 = vpack.c.bf16 %v1410, %v1409
        %v1449 = vpack.c.bf16 %v1412, %v1411
        %v1450 = vpack.c.bf16 %v1414, %v1413
        %v1451 = vpack.c.bf16 %v1416, %v1415
        %v1452 = vpack.c.bf16 %v1418, %v1417
        %v1453 = vpack.c.bf16 %v1420, %v1419
        %v1454 = vpack.c.bf16 %v1422, %v1421
        %v1455 = vunpack.c.l.bf16 %v1423
        %v1456 = vunpack.c.h.bf16 %v1423
        %v1457 = vunpack.c.l.bf16 %v1424
        %v1458 = vunpack.c.h.bf16 %v1424
        %v1459 = vunpack.c.l.bf16 %v1425
        %v1460 = vunpack.c.h.bf16 %v1425
        %v1461 = vunpack.c.l.bf16 %v1426
        %v1462 = vunpack.c.h.bf16 %v1426
        %v1463 = vunpack.c.l.bf16 %v1427
        %v1464 = vunpack.c.h.bf16 %v1427
        %v1465 = vunpack.c.l.bf16 %v1428
        %v1466 = vunpack.c.h.bf16 %v1428
        %v1467 = vunpack.c.l.bf16 %v1429
        %v1468 = vunpack.c.h.bf16 %v1429
        %v1469 = vunpack.c.l.bf16 %v1430
        %v1470 = vunpack.c.h.bf16 %v1430
        %v1471 = vunpack.c.l.bf16 %v1431
        %v1472 = vunpack.c.h.bf16 %v1431
        %v1473 = vunpack.c.l.bf16 %v1432
        %v1474 = vunpack.c.h.bf16 %v1432
        %v1475 = vunpack.c.l.bf16 %v1433
        %v1476 = vunpack.c.h.bf16 %v1433
        %v1477 = vunpack.c.l.bf16 %v1434
        %v1478 = vunpack.c.h.bf16 %v1434
        %v1479 = vunpack.c.l.bf16 %v1435
        %v1480 = vunpack.c.h.bf16 %v1435
        %v1481 = vunpack.c.l.bf16 %v1436
        %v1482 = vunpack.c.h.bf16 %v1436
        %v1483 = vunpack.c.l.bf16 %v1437
        %v1484 = vunpack.c.h.bf16 %v1437
        %v1485 = vunpack.c.l.bf16 %v1438
        %v1486 = vunpack.c.h.bf16 %v1438
        %v1487 = vunpack.c.l.bf16 %v1439
        %v1488 = vunpack.c.h.bf16 %v1439
        %v1489 = vunpack.c.l.bf16 %v1440
        %v1490 = vunpack.c.h.bf16 %v1440
        %v1491 = vunpack.c.l.bf16 %v1441
        %v1492 = vunpack.c.h.bf16 %v1441
        %v1493 = vunpack.c.l.bf16 %v1442
        %v1494 = vunpack.c.h.bf16 %v1442
        %v1495 = vunpack.c.l.bf16 %v1443
        %v1496 = vunpack.c.h.bf16 %v1443
        %v1497 = vunpack.c.l.bf16 %v1444
        %v1498 = vunpack.c.h.bf16 %v1444
        %v1499 = vunpack.c.l.bf16 %v1445
        %v1500 = vunpack.c.h.bf16 %v1445
        %v1501 = vunpack.c.l.bf16 %v1446
        %v1502 = vunpack.c.h.bf16 %v1446
        %v1503 = vunpack.c.l.bf16 %v1447
        %v1504 = vunpack.c.h.bf16 %v1447
        %v1505 = vunpack.c.l.bf16 %v1448
        %v1506 = vunpack.c.h.bf16 %v1448
        %v1507 = vunpack.c.l.bf16 %v1449
        %v1508 = vunpack.c.h.bf16 %v1449
        %v1509 = vunpack.c.l.bf16 %v1450
        %v1510 = vunpack.c.h.bf16 %v1450
        %v1511 = vunpack.c.l.bf16 %v1451
        %v1512 = vunpack.c.h.bf16 %v1451
        %v1513 = vunpack.c.l.bf16 %v1452
        %v1514 = vunpack.c.h.bf16 %v1452
        %v1515 = vunpack.c.l.bf16 %v1453
        %v1516 = vunpack.c.h.bf16 %v1453
        %v1517 = vunpack.c.l.bf16 %v1454
        %v1518 = vunpack.c.h.bf16 %v1454
        %v1519 = vmul.f32 %v1455, 1.442695
        %v1520 = vpow.pop %v1519
        %v1521 = vmul.f32 %v1456, 1.442695
        %v1522 = vpow.pop %v1521
        %v1523 = vmul.f32 %v1457, 1.442695
        %v1524 = vpow.pop %v1523
        %v1525 = vmul.f32 %v1458, 1.442695
        %v1526 = vpow.pop %v1525
        %v1527 = vmul.f32 %v1459, 1.442695
        %v1528 = vpow.pop %v1527
        %v1529 = vmul.f32 %v1460, 1.442695
        %v1530 = vpow.pop %v1529
        %v1531 = vmul.f32 %v1461, 1.442695
        %v1532 = vpow.pop %v1531
        %v1533 = vmul.f32 %v1462, 1.442695
        %v1534 = vpow.pop %v1533
        %v1535 = vmul.f32 %v1463, 1.442695
        %v1536 = vpow.pop %v1535
        %v1537 = vmul.f32 %v1464, 1.442695
        %v1538 = vpow.pop %v1537
        %v1539 = vmul.f32 %v1465, 1.442695
        %v1540 = vpow.pop %v1539
        %v1541 = vmul.f32 %v1466, 1.442695
        %v1542 = vpow.pop %v1541
        %v1543 = vmul.f32 %v1467, 1.442695
        %v1544 = vpow.pop %v1543
        %v1545 = vmul.f32 %v1468, 1.442695
        %v1546 = vpow.pop %v1545
        %v1547 = vmul.f32 %v1469, 1.442695
        %v1548 = vpow.pop %v1547
        %v1549 = vmul.f32 %v1470, 1.442695
        %v1550 = vpow.pop %v1549
        %v1551 = vmul.f32 %v1471, 1.442695
        %v1552 = vpow.pop %v1551
        %v1553 = vmul.f32 %v1472, 1.442695
        %v1554 = vpow.pop %v1553
        %v1555 = vmul.f32 %v1473, 1.442695
        %v1556 = vpow.pop %v1555
        %v1557 = vmul.f32 %v1474, 1.442695
        %v1558 = vpow.pop %v1557
        %v1559 = vmul.f32 %v1475, 1.442695
        %v1560 = vpow.pop %v1559
        %v1561 = vmul.f32 %v1476, 1.442695
        %v1562 = vpow.pop %v1561
        %v1563 = vmul.f32 %v1477, 1.442695
        %v1564 = vpow.pop %v1563
        %v1565 = vmul.f32 %v1478, 1.442695
        %v1566 = vpow.pop %v1565
        %v1567 = vmul.f32 %v1479, 1.442695
        %v1568 = vpow.pop %v1567
        %v1569 = vmul.f32 %v1480, 1.442695
        %v1570 = vpow.pop %v1569
        %v1571 = vmul.f32 %v1481, 1.442695
        %v1572 = vpow.pop %v1571
        %v1573 = vmul.f32 %v1482, 1.442695
        %v1574 = vpow.pop %v1573
        %v1575 = vmul.f32 %v1483, 1.442695
        %v1576 = vpow.pop %v1575
        %v1577 = vmul.f32 %v1484, 1.442695
        %v1578 = vpow.pop %v1577
        %v1579 = vmul.f32 %v1485, 1.442695
        %v1580 = vpow.pop %v1579
        %v1581 = vmul.f32 %v1486, 1.442695
        %v1582 = vpow.pop %v1581
        %v1583 = vmul.f32 %v1487, 1.442695
        %v1584 = vpow.pop %v1583
        %v1585 = vmul.f32 %v1488, 1.442695
        %v1586 = vpow.pop %v1585
        %v1587 = vmul.f32 %v1489, 1.442695
        %v1588 = vpow.pop %v1587
        %v1589 = vmul.f32 %v1490, 1.442695
        %v1590 = vpow.pop %v1589
        %v1591 = vmul.f32 %v1491, 1.442695
        %v1592 = vpow.pop %v1591
        %v1593 = vmul.f32 %v1492, 1.442695
        %v1594 = vpow.pop %v1593
        %v1595 = vmul.f32 %v1493, 1.442695
        %v1596 = vpow.pop %v1595
        %v1597 = vmul.f32 %v1494, 1.442695
        %v1598 = vpow.pop %v1597
        %v1599 = vmul.f32 %v1495, 1.442695
        %v1600 = vpow.pop %v1599
        %v1601 = vmul.f32 %v1496, 1.442695
        %v1602 = vpow.pop %v1601
        %v1603 = vmul.f32 %v1497, 1.442695
        %v1604 = vpow.pop %v1603
        %v1605 = vmul.f32 %v1498, 1.442695
        %v1606 = vpow.pop %v1605
        %v1607 = vmul.f32 %v1499, 1.442695
        %v1608 = vpow.pop %v1607
        %v1609 = vmul.f32 %v1500, 1.442695
        %v1610 = vpow.pop %v1609
        %v1611 = vmul.f32 %v1501, 1.442695
        %v1612 = vpow.pop %v1611
        %v1613 = vmul.f32 %v1502, 1.442695
        %v1614 = vpow.pop %v1613
        %v1615 = vmul.f32 %v1503, 1.442695
        %v1616 = vpow.pop %v1615
        %v1617 = vmul.f32 %v1504, 1.442695
        %v1618 = vpow.pop %v1617
        %v1619 = vmul.f32 %v1505, 1.442695
        %v1620 = vpow.pop %v1619
        %v1621 = vmul.f32 %v1506, 1.442695
        %v1622 = vpow.pop %v1621
        %v1623 = vmul.f32 %v1507, 1.442695
        %v1624 = vpow.pop %v1623
        %v1625 = vmul.f32 %v1508, 1.442695
        %v1626 = vpow.pop %v1625
        %v1627 = vmul.f32 %v1509, 1.442695
        %v1628 = vpow.pop %v1627
        %v1629 = vmul.f32 %v1510, 1.442695
        %v1630 = vpow.pop %v1629
        %v1631 = vmul.f32 %v1511, 1.442695
        %v1632 = vpow.pop %v1631
        %v1633 = vmul.f32 %v1512, 1.442695
        %v1634 = vpow.pop %v1633
        %v1635 = vmul.f32 %v1513, 1.442695
        %v1636 = vpow.pop %v1635
        %v1637 = vmul.f32 %v1514, 1.442695
        %v1638 = vpow.pop %v1637
        %v1639 = vmul.f32 %v1515, 1.442695
        %v1640 = vpow.pop %v1639
        %v1641 = vmul.f32 %v1516, 1.442695
        %v1642 = vpow.pop %v1641
        %v1643 = vmul.f32 %v1517, 1.442695
        %v1644 = vpow.pop %v1643
        %v1645 = vmul.f32 %v1518, 1.442695
        %v1646 = vpow.pop %v1645
        %v1647 = vpack.c.bf16 %v1522, %v1520
        %v1648 = vpack.c.bf16 %v1526, %v1524
        %v1649 = vpack.c.bf16 %v1530, %v1528
        %v1650 = vpack.c.bf16 %v1534, %v1532
        %v1651 = vpack.c.bf16 %v1538, %v1536
        %v1652 = vpack.c.bf16 %v1542, %v1540
        %v1653 = vpack.c.bf16 %v1546, %v1544
        %v1654 = vpack.c.bf16 %v1550, %v1548
        %v1655 = vpack.c.bf16 %v1554, %v1552
        %v1656 = vpack.c.bf16 %v1558, %v1556
        %v1657 = vpack.c.bf16 %v1562, %v1560
        %v1658 = vpack.c.bf16 %v1566, %v1564
        %v1659 = vpack.c.bf16 %v1570, %v1568
        %v1660 = vpack.c.bf16 %v1574, %v1572
        %v1661 = vpack.c.bf16 %v1578, %v1576
        %v1662 = vpack.c.bf16 %v1582, %v1580
        %v1663 = vpack.c.bf16 %v1586, %v1584
        %v1664 = vpack.c.bf16 %v1590, %v1588
        %v1665 = vpack.c.bf16 %v1594, %v1592
        %v1666 = vpack.c.bf16 %v1598, %v1596
        %v1667 = vpack.c.bf16 %v1602, %v1600
        %v1668 = vpack.c.bf16 %v1606, %v1604
        %v1669 = vpack.c.bf16 %v1610, %v1608
        %v1670 = vpack.c.bf16 %v1614, %v1612
        %v1671 = vpack.c.bf16 %v1618, %v1616
        %v1672 = vpack.c.bf16 %v1622, %v1620
        %v1673 = vpack.c.bf16 %v1626, %v1624
        %v1674 = vpack.c.bf16 %v1630, %v1628
        %v1675 = vpack.c.bf16 %v1634, %v1632
        %v1676 = vpack.c.bf16 %v1638, %v1636
        %v1677 = vpack.c.bf16 %v1642, %v1640
        %v1678 = vpack.c.bf16 %v1646, %v1644
        %v1679 = vunpack.c.l.bf16 %v1647
        %v1680 = vunpack.c.h.bf16 %v1647
        %v1681 = vunpack.c.l.bf16 %v1648
        %v1682 = vunpack.c.h.bf16 %v1648
        %v1683 = vunpack.c.l.bf16 %v1649
        %v1684 = vunpack.c.h.bf16 %v1649
        %v1685 = vunpack.c.l.bf16 %v1650
        %v1686 = vunpack.c.h.bf16 %v1650
        %v1687 = vunpack.c.l.bf16 %v1651
        %v1688 = vunpack.c.h.bf16 %v1651
        %v1689 = vunpack.c.l.bf16 %v1652
        %v1690 = vunpack.c.h.bf16 %v1652
        %v1691 = vunpack.c.l.bf16 %v1653
        %v1692 = vunpack.c.h.bf16 %v1653
        %v1693 = vunpack.c.l.bf16 %v1654
        %v1694 = vunpack.c.h.bf16 %v1654
        %v1695 = vunpack.c.l.bf16 %v1655
        %v1696 = vunpack.c.h.bf16 %v1655
        %v1697 = vunpack.c.l.bf16 %v1656
        %v1698 = vunpack.c.h.bf16 %v1656
        %v1699 = vunpack.c.l.bf16 %v1657
        %v1700 = vunpack.c.h.bf16 %v1657
        %v1701 = vunpack.c.l.bf16 %v1658
        %v1702 = vunpack.c.h.bf16 %v1658
        %v1703 = vunpack.c.l.bf16 %v1659
        %v1704 = vunpack.c.h.bf16 %v1659
        %v1705 = vunpack.c.l.bf16 %v1660
        %v1706 = vunpack.c.h.bf16 %v1660
        %v1707 = vunpack.c.l.bf16 %v1661
        %v1708 = vunpack.c.h.bf16 %v1661
        %v1709 = vunpack.c.l.bf16 %v1662
        %v1710 = vunpack.c.h.bf16 %v1662
        %v1711 = vunpack.c.l.bf16 %v1663
        %v1712 = vunpack.c.h.bf16 %v1663
        %v1713 = vunpack.c.l.bf16 %v1664
        %v1714 = vunpack.c.h.bf16 %v1664
        %v1715 = vunpack.c.l.bf16 %v1665
        %v1716 = vunpack.c.h.bf16 %v1665
        %v1717 = vunpack.c.l.bf16 %v1666
        %v1718 = vunpack.c.h.bf16 %v1666
        %v1719 = vunpack.c.l.bf16 %v1667
        %v1720 = vunpack.c.h.bf16 %v1667
        %v1721 = vunpack.c.l.bf16 %v1668
        %v1722 = vunpack.c.h.bf16 %v1668
        %v1723 = vunpack.c.l.bf16 %v1669
        %v1724 = vunpack.c.h.bf16 %v1669
        %v1725 = vunpack.c.l.bf16 %v1670
        %v1726 = vunpack.c.h.bf16 %v1670
        %v1727 = vunpack.c.l.bf16 %v1671
        %v1728 = vunpack.c.h.bf16 %v1671
        %v1729 = vunpack.c.l.bf16 %v1672
        %v1730 = vunpack.c.h.bf16 %v1672
        %v1731 = vunpack.c.l.bf16 %v1673
        %v1732 = vunpack.c.h.bf16 %v1673
        %v1733 = vunpack.c.l.bf16 %v1674
        %v1734 = vunpack.c.h.bf16 %v1674
        %v1735 = vunpack.c.l.bf16 %v1675
        %v1736 = vunpack.c.h.bf16 %v1675
        %v1737 = vunpack.c.l.bf16 %v1676
        %v1738 = vunpack.c.h.bf16 %v1676
        %v1739 = vunpack.c.l.bf16 %v1677
        %v1740 = vunpack.c.h.bf16 %v1677
        %v1741 = vunpack.c.l.bf16 %v1678
        %v1742 = vunpack.c.h.bf16 %v1678
        %v1743 = vadd.f32 %v1679, %v1680
        %v1744 = vadd.f32 %v1743, %v1681
        %v1745 = vadd.f32 %v1744, %v1682
        %1746 = vadd.xlane.f32.xlu0 %v1745
        %v1747 = vpop.xlane.xlu0 %1746
        %v1748 = vadd.f32 %v1683, %v1684
        %v1749 = vadd.f32 %v1748, %v1685
        %v1750 = vadd.f32 %v1749, %v1686
        %1751 = vadd.xlane.f32.xlu0 %v1750
        %v1752 = vpop.xlane.xlu0 %1751
        %v1753 = vadd.f32 %v1687, %v1688
        %v1754 = vadd.f32 %v1753, %v1689
        %v1755 = vadd.f32 %v1754, %v1690
        %1756 = vadd.xlane.f32.xlu0 %v1755
        %v1757 = vpop.xlane.xlu0 %1756
        %v1758 = vadd.f32 %v1691, %v1692
        %v1759 = vadd.f32 %v1758, %v1693
        %v1760 = vadd.f32 %v1759, %v1694
        %1761 = vadd.xlane.f32.xlu0 %v1760
        %v1762 = vpop.xlane.xlu0 %1761
        %v1763 = vadd.f32 %v1695, %v1696
        %v1764 = vadd.f32 %v1763, %v1697
        %v1765 = vadd.f32 %v1764, %v1698
        %1766 = vadd.xlane.f32.xlu0 %v1765
        %v1767 = vpop.xlane.xlu0 %1766
        %v1768 = vadd.f32 %v1699, %v1700
        %v1769 = vadd.f32 %v1768, %v1701
        %v1770 = vadd.f32 %v1769, %v1702
        %1771 = vadd.xlane.f32.xlu0 %v1770
        %v1772 = vpop.xlane.xlu0 %1771
        %v1773 = vadd.f32 %v1703, %v1704
        %v1774 = vadd.f32 %v1773, %v1705
        %v1775 = vadd.f32 %v1774, %v1706
        %1776 = vadd.xlane.f32.xlu0 %v1775
        %v1777 = vpop.xlane.xlu0 %1776
        %v1778 = vadd.f32 %v1707, %v1708
        %v1779 = vadd.f32 %v1778, %v1709
        %v1780 = vadd.f32 %v1779, %v1710
        %1781 = vadd.xlane.f32.xlu0 %v1780
        %v1782 = vpop.xlane.xlu0 %1781
        %v1783 = vadd.f32 %v1711, %v1712
        %v1784 = vadd.f32 %v1783, %v1713
        %v1785 = vadd.f32 %v1784, %v1714
        %1786 = vadd.xlane.f32.xlu0 %v1785
        %v1787 = vpop.xlane.xlu0 %1786
        %v1788 = vadd.f32 %v1715, %v1716
        %v1789 = vadd.f32 %v1788, %v1717
        %v1790 = vadd.f32 %v1789, %v1718
        %1791 = vadd.xlane.f32.xlu0 %v1790
        %v1792 = vpop.xlane.xlu0 %1791
        %v1793 = vadd.f32 %v1719, %v1720
        %v1794 = vadd.f32 %v1793, %v1721
        %v1795 = vadd.f32 %v1794, %v1722
        %1796 = vadd.xlane.f32.xlu0 %v1795
        %v1797 = vpop.xlane.xlu0 %1796
        %v1798 = vadd.f32 %v1723, %v1724
        %v1799 = vadd.f32 %v1798, %v1725
        %v1800 = vadd.f32 %v1799, %v1726
        %1801 = vadd.xlane.f32.xlu0 %v1800
        %v1802 = vpop.xlane.xlu0 %1801
        %v1803 = vadd.f32 %v1727, %v1728
        %v1804 = vadd.f32 %v1803, %v1729
        %v1805 = vadd.f32 %v1804, %v1730
        %1806 = vadd.xlane.f32.xlu0 %v1805
        %v1807 = vpop.xlane.xlu0 %1806
        %v1808 = vadd.f32 %v1731, %v1732
        %v1809 = vadd.f32 %v1808, %v1733
        %v1810 = vadd.f32 %v1809, %v1734
        %1811 = vadd.xlane.f32.xlu0 %v1810
        %v1812 = vpop.xlane.xlu0 %1811
        %v1813 = vadd.f32 %v1735, %v1736
        %v1814 = vadd.f32 %v1813, %v1737
        %v1815 = vadd.f32 %v1814, %v1738
        %1816 = vadd.xlane.f32.xlu0 %v1815
        %v1817 = vpop.xlane.xlu0 %1816
        %v1818 = vadd.f32 %v1739, %v1740
        %v1819 = vadd.f32 %v1818, %v1741
        %v1820 = vadd.f32 %v1819, %v1742
        %1821 = vadd.xlane.f32.xlu0 %v1820
        %v1822 = vpop.xlane.xlu0 %1821
        %v1823 = vrcp.pop %v1747
        %v1824 = vmul.f32 %v1747, %v1823
        %v1825 = vsub.f32 1.0, %v1824
        %v1826 = vmul.f32 %v1823, %v1825
        %v1827 = vadd.f32 %v1823, %v1826
        %vm1828 = vweird.f32 %v1747
        %vm1829 = vweird.f32 %v1823
        %vm1830 = vmor %vm1828, %vm1829
        %v1831 = vsel %vm1830, %v1823, %v1827
        %v1832 = vand.u32 2147483647, %v1747
        %vm1833 = vcmp.eq.f32.partialorder %v1832, 8.507059e+37
        %v1834 = vand.u32 %v1747, 2147483648
        %v1835 = vor.u32 1.1754944e-38, %v1834
        %v1836 = vsel %vm1833, %v1835, %v1831
        %v1837 = vmul.f32 1.0, %v1836
        %v1838 = vrcp.pop %v1752
        %v1839 = vmul.f32 %v1752, %v1838
        %v1840 = vsub.f32 1.0, %v1839
        %v1841 = vmul.f32 %v1838, %v1840
        %v1842 = vadd.f32 %v1838, %v1841
        %vm1843 = vweird.f32 %v1752
        %vm1844 = vweird.f32 %v1838
        %vm1845 = vmor %vm1843, %vm1844
        %v1846 = vsel %vm1845, %v1838, %v1842
        %v1847 = vand.u32 2147483647, %v1752
        %vm1848 = vcmp.eq.f32.partialorder %v1847, 8.507059e+37
        %v1849 = vand.u32 %v1752, 2147483648
        %v1850 = vor.u32 1.1754944e-38, %v1849
        %v1851 = vsel %vm1848, %v1850, %v1846
        %v1852 = vmul.f32 1.0, %v1851
        %v1853 = vrcp.pop %v1757
        %v1854 = vmul.f32 %v1757, %v1853
        %v1855 = vsub.f32 1.0, %v1854
        %v1856 = vmul.f32 %v1853, %v1855
        %v1857 = vadd.f32 %v1853, %v1856
        %vm1858 = vweird.f32 %v1757
        %vm1859 = vweird.f32 %v1853
        %vm1860 = vmor %vm1858, %vm1859
        %v1861 = vsel %vm1860, %v1853, %v1857
        %v1862 = vand.u32 2147483647, %v1757
        %vm1863 = vcmp.eq.f32.partialorder %v1862, 8.507059e+37
        %v1864 = vand.u32 %v1757, 2147483648
        %v1865 = vor.u32 1.1754944e-38, %v1864
        %v1866 = vsel %vm1863, %v1865, %v1861
        %v1867 = vmul.f32 1.0, %v1866
        %v1868 = vrcp.pop %v1762
        %v1869 = vmul.f32 %v1762, %v1868
        %v1870 = vsub.f32 1.0, %v1869
        %v1871 = vmul.f32 %v1868, %v1870
        %v1872 = vadd.f32 %v1868, %v1871
        %vm1873 = vweird.f32 %v1762
        %vm1874 = vweird.f32 %v1868
        %vm1875 = vmor %vm1873, %vm1874
        %v1876 = vsel %vm1875, %v1868, %v1872
        %v1877 = vand.u32 2147483647, %v1762
        %vm1878 = vcmp.eq.f32.partialorder %v1877, 8.507059e+37
        %v1879 = vand.u32 %v1762, 2147483648
        %v1880 = vor.u32 1.1754944e-38, %v1879
        %v1881 = vsel %vm1878, %v1880, %v1876
        %v1882 = vmul.f32 1.0, %v1881
        %v1883 = vrcp.pop %v1767
        %v1884 = vmul.f32 %v1767, %v1883
        %v1885 = vsub.f32 1.0, %v1884
        %v1886 = vmul.f32 %v1883, %v1885
        %v1887 = vadd.f32 %v1883, %v1886
        %vm1888 = vweird.f32 %v1767
        %vm1889 = vweird.f32 %v1883
        %vm1890 = vmor %vm1888, %vm1889
        %v1891 = vsel %vm1890, %v1883, %v1887
        %v1892 = vand.u32 2147483647, %v1767
        %vm1893 = vcmp.eq.f32.partialorder %v1892, 8.507059e+37
        %v1894 = vand.u32 %v1767, 2147483648
        %v1895 = vor.u32 1.1754944e-38, %v1894
        %v1896 = vsel %vm1893, %v1895, %v1891
        %v1897 = vmul.f32 1.0, %v1896
        %v1898 = vrcp.pop %v1772
        %v1899 = vmul.f32 %v1772, %v1898
        %v1900 = vsub.f32 1.0, %v1899
        %v1901 = vmul.f32 %v1898, %v1900
        %v1902 = vadd.f32 %v1898, %v1901
        %vm1903 = vweird.f32 %v1772
        %vm1904 = vweird.f32 %v1898
        %vm1905 = vmor %vm1903, %vm1904
        %v1906 = vsel %vm1905, %v1898, %v1902
        %v1907 = vand.u32 2147483647, %v1772
        %vm1908 = vcmp.eq.f32.partialorder %v1907, 8.507059e+37
        %v1909 = vand.u32 %v1772, 2147483648
        %v1910 = vor.u32 1.1754944e-38, %v1909
        %v1911 = vsel %vm1908, %v1910, %v1906
        %v1912 = vmul.f32 1.0, %v1911
        %v1913 = vrcp.pop %v1777
        %v1914 = vmul.f32 %v1777, %v1913
        %v1915 = vsub.f32 1.0, %v1914
        %v1916 = vmul.f32 %v1913, %v1915
        %v1917 = vadd.f32 %v1913, %v1916
        %vm1918 = vweird.f32 %v1777
        %vm1919 = vweird.f32 %v1913
        %vm1920 = vmor %vm1918, %vm1919
        %v1921 = vsel %vm1920, %v1913, %v1917
        %v1922 = vand.u32 2147483647, %v1777
        %vm1923 = vcmp.eq.f32.partialorder %v1922, 8.507059e+37
        %v1924 = vand.u32 %v1777, 2147483648
        %v1925 = vor.u32 1.1754944e-38, %v1924
        %v1926 = vsel %vm1923, %v1925, %v1921
        %v1927 = vmul.f32 1.0, %v1926
        %v1928 = vrcp.pop %v1782
        %v1929 = vmul.f32 %v1782, %v1928
        %v1930 = vsub.f32 1.0, %v1929
        %v1931 = vmul.f32 %v1928, %v1930
        %v1932 = vadd.f32 %v1928, %v1931
        %vm1933 = vweird.f32 %v1782
        %vm1934 = vweird.f32 %v1928
        %vm1935 = vmor %vm1933, %vm1934
        %v1936 = vsel %vm1935, %v1928, %v1932
        %v1937 = vand.u32 2147483647, %v1782
        %vm1938 = vcmp.eq.f32.partialorder %v1937, 8.507059e+37
        %v1939 = vand.u32 %v1782, 2147483648
        %v1940 = vor.u32 1.1754944e-38, %v1939
        %v1941 = vsel %vm1938, %v1940, %v1936
        %v1942 = vmul.f32 1.0, %v1941
        %v1943 = vrcp.pop %v1787
        %v1944 = vmul.f32 %v1787, %v1943
        %v1945 = vsub.f32 1.0, %v1944
        %v1946 = vmul.f32 %v1943, %v1945
        %v1947 = vadd.f32 %v1943, %v1946
        %vm1948 = vweird.f32 %v1787
        %vm1949 = vweird.f32 %v1943
        %vm1950 = vmor %vm1948, %vm1949
        %v1951 = vsel %vm1950, %v1943, %v1947
        %v1952 = vand.u32 2147483647, %v1787
        %vm1953 = vcmp.eq.f32.partialorder %v1952, 8.507059e+37
        %v1954 = vand.u32 %v1787, 2147483648
        %v1955 = vor.u32 1.1754944e-38, %v1954
        %v1956 = vsel %vm1953, %v1955, %v1951
        %v1957 = vmul.f32 1.0, %v1956
        %v1958 = vrcp.pop %v1792
        %v1959 = vmul.f32 %v1792, %v1958
        %v1960 = vsub.f32 1.0, %v1959
        %v1961 = vmul.f32 %v1958, %v1960
        %v1962 = vadd.f32 %v1958, %v1961
        %vm1963 = vweird.f32 %v1792
        %vm1964 = vweird.f32 %v1958
        %vm1965 = vmor %vm1963, %vm1964
        %v1966 = vsel %vm1965, %v1958, %v1962
        %v1967 = vand.u32 2147483647, %v1792
        %vm1968 = vcmp.eq.f32.partialorder %v1967, 8.507059e+37
        %v1969 = vand.u32 %v1792, 2147483648
        %v1970 = vor.u32 1.1754944e-38, %v1969
        %v1971 = vsel %vm1968, %v1970, %v1966
        %v1972 = vmul.f32 1.0, %v1971
        %v1973 = vrcp.pop %v1797
        %v1974 = vmul.f32 %v1797, %v1973
        %v1975 = vsub.f32 1.0, %v1974
        %v1976 = vmul.f32 %v1973, %v1975
        %v1977 = vadd.f32 %v1973, %v1976
        %vm1978 = vweird.f32 %v1797
        %vm1979 = vweird.f32 %v1973
        %vm1980 = vmor %vm1978, %vm1979
        %v1981 = vsel %vm1980, %v1973, %v1977
        %v1982 = vand.u32 2147483647, %v1797
        %vm1983 = vcmp.eq.f32.partialorder %v1982, 8.507059e+37
        %v1984 = vand.u32 %v1797, 2147483648
        %v1985 = vor.u32 1.1754944e-38, %v1984
        %v1986 = vsel %vm1983, %v1985, %v1981
        %v1987 = vmul.f32 1.0, %v1986
        %v1988 = vrcp.pop %v1802
        %v1989 = vmul.f32 %v1802, %v1988
        %v1990 = vsub.f32 1.0, %v1989
        %v1991 = vmul.f32 %v1988, %v1990
        %v1992 = vadd.f32 %v1988, %v1991
        %vm1993 = vweird.f32 %v1802
        %vm1994 = vweird.f32 %v1988
        %vm1995 = vmor %vm1993, %vm1994
        %v1996 = vsel %vm1995, %v1988, %v1992
        %v1997 = vand.u32 2147483647, %v1802
        %vm1998 = vcmp.eq.f32.partialorder %v1997, 8.507059e+37
        %v1999 = vand.u32 %v1802, 2147483648
        %v2000 = vor.u32 1.1754944e-38, %v1999
        %v2001 = vsel %vm1998, %v2000, %v1996
        %v2002 = vmul.f32 1.0, %v2001
        %v2003 = vrcp.pop %v1807
        %v2004 = vmul.f32 %v1807, %v2003
        %v2005 = vsub.f32 1.0, %v2004
        %v2006 = vmul.f32 %v2003, %v2005
        %v2007 = vadd.f32 %v2003, %v2006
        %vm2008 = vweird.f32 %v1807
        %vm2009 = vweird.f32 %v2003
        %vm2010 = vmor %vm2008, %vm2009
        %v2011 = vsel %vm2010, %v2003, %v2007
        %v2012 = vand.u32 2147483647, %v1807
        %vm2013 = vcmp.eq.f32.partialorder %v2012, 8.507059e+37
        %v2014 = vand.u32 %v1807, 2147483648
        %v2015 = vor.u32 1.1754944e-38, %v2014
        %v2016 = vsel %vm2013, %v2015, %v2011
        %v2017 = vmul.f32 1.0, %v2016
        %v2018 = vrcp.pop %v1812
        %v2019 = vmul.f32 %v1812, %v2018
        %v2020 = vsub.f32 1.0, %v2019
        %v2021 = vmul.f32 %v2018, %v2020
        %v2022 = vadd.f32 %v2018, %v2021
        %vm2023 = vweird.f32 %v1812
        %vm2024 = vweird.f32 %v2018
        %vm2025 = vmor %vm2023, %vm2024
        %v2026 = vsel %vm2025, %v2018, %v2022
        %v2027 = vand.u32 2147483647, %v1812
        %vm2028 = vcmp.eq.f32.partialorder %v2027, 8.507059e+37
        %v2029 = vand.u32 %v1812, 2147483648
        %v2030 = vor.u32 1.1754944e-38, %v2029
        %v2031 = vsel %vm2028, %v2030, %v2026
        %v2032 = vmul.f32 1.0, %v2031
        %v2033 = vrcp.pop %v1817
        %v2034 = vmul.f32 %v1817, %v2033
        %v2035 = vsub.f32 1.0, %v2034
        %v2036 = vmul.f32 %v2033, %v2035
        %v2037 = vadd.f32 %v2033, %v2036
        %vm2038 = vweird.f32 %v1817
        %vm2039 = vweird.f32 %v2033
        %vm2040 = vmor %vm2038, %vm2039
        %v2041 = vsel %vm2040, %v2033, %v2037
        %v2042 = vand.u32 2147483647, %v1817
        %vm2043 = vcmp.eq.f32.partialorder %v2042, 8.507059e+37
        %v2044 = vand.u32 %v1817, 2147483648
        %v2045 = vor.u32 1.1754944e-38, %v2044
        %v2046 = vsel %vm2043, %v2045, %v2041
        %v2047 = vmul.f32 1.0, %v2046
        %v2048 = vrcp.pop %v1822
        %v2049 = vmul.f32 %v1822, %v2048
        %v2050 = vsub.f32 1.0, %v2049
        %v2051 = vmul.f32 %v2048, %v2050
        %v2052 = vadd.f32 %v2048, %v2051
        %vm2053 = vweird.f32 %v1822
        %vm2054 = vweird.f32 %v2048
        %vm2055 = vmor %vm2053, %vm2054
        %v2056 = vsel %vm2055, %v2048, %v2052
        %v2057 = vand.u32 2147483647, %v1822
        %vm2058 = vcmp.eq.f32.partialorder %v2057, 8.507059e+37
        %v2059 = vand.u32 %v1822, 2147483648
        %v2060 = vor.u32 1.1754944e-38, %v2059
        %v2061 = vsel %vm2058, %v2060, %v2056
        %v2062 = vmul.f32 1.0, %v2061
        %v2063 = vmul.f32 %v1679, %v1837
        %v2064 = vmul.f32 %v1680, %v1837
        %v2065 = vmul.f32 %v1681, %v1837
        %v2066 = vmul.f32 %v1682, %v1837
        %v2067 = vmul.f32 %v1683, %v1852
        %v2068 = vmul.f32 %v1684, %v1852
        %v2069 = vmul.f32 %v1685, %v1852
        %v2070 = vmul.f32 %v1686, %v1852
        %v2071 = vmul.f32 %v1687, %v1867
        %v2072 = vmul.f32 %v1688, %v1867
        %v2073 = vmul.f32 %v1689, %v1867
        %v2074 = vmul.f32 %v1690, %v1867
        %v2075 = vmul.f32 %v1691, %v1882
        %v2076 = vmul.f32 %v1692, %v1882
        %v2077 = vmul.f32 %v1693, %v1882
        %v2078 = vmul.f32 %v1694, %v1882
        %v2079 = vmul.f32 %v1695, %v1897
        %v2080 = vmul.f32 %v1696, %v1897
        %v2081 = vmul.f32 %v1697, %v1897
        %v2082 = vmul.f32 %v1698, %v1897
        %v2083 = vmul.f32 %v1699, %v1912
        %v2084 = vmul.f32 %v1700, %v1912
        %v2085 = vmul.f32 %v1701, %v1912
        %v2086 = vmul.f32 %v1702, %v1912
        %v2087 = vmul.f32 %v1703, %v1927
        %v2088 = vmul.f32 %v1704, %v1927
        %v2089 = vmul.f32 %v1705, %v1927
        %v2090 = vmul.f32 %v1706, %v1927
        %v2091 = vmul.f32 %v1707, %v1942
        %v2092 = vmul.f32 %v1708, %v1942
        %v2093 = vmul.f32 %v1709, %v1942
        %v2094 = vmul.f32 %v1710, %v1942
        %v2095 = vmul.f32 %v1711, %v1957
        %v2096 = vmul.f32 %v1712, %v1957
        %v2097 = vmul.f32 %v1713, %v1957
        %v2098 = vmul.f32 %v1714, %v1957
        %v2099 = vmul.f32 %v1715, %v1972
        %v2100 = vmul.f32 %v1716, %v1972
        %v2101 = vmul.f32 %v1717, %v1972
        %v2102 = vmul.f32 %v1718, %v1972
        %v2103 = vmul.f32 %v1719, %v1987
        %v2104 = vmul.f32 %v1720, %v1987
        %v2105 = vmul.f32 %v1721, %v1987
        %v2106 = vmul.f32 %v1722, %v1987
        %v2107 = vmul.f32 %v1723, %v2002
        %v2108 = vmul.f32 %v1724, %v2002
        %v2109 = vmul.f32 %v1725, %v2002
        %v2110 = vmul.f32 %v1726, %v2002
        %v2111 = vmul.f32 %v1727, %v2017
        %v2112 = vmul.f32 %v1728, %v2017
        %v2113 = vmul.f32 %v1729, %v2017
        %v2114 = vmul.f32 %v1730, %v2017
        %v2115 = vmul.f32 %v1731, %v2032
        %v2116 = vmul.f32 %v1732, %v2032
        %v2117 = vmul.f32 %v1733, %v2032
        %v2118 = vmul.f32 %v1734, %v2032
        %v2119 = vmul.f32 %v1735, %v2047
        %v2120 = vmul.f32 %v1736, %v2047
        %v2121 = vmul.f32 %v1737, %v2047
        %v2122 = vmul.f32 %v1738, %v2047
        %v2123 = vmul.f32 %v1739, %v2062
        %v2124 = vmul.f32 %v1740, %v2062
        %v2125 = vmul.f32 %v1741, %v2062
        %v2126 = vmul.f32 %v1742, %v2062
        %v2127 = vmax.f32 %v2063, %v2067
        %v2128 = vmax.f32 %v2127, %v2071
        %v2129 = vmax.f32 %v2128, %v2075
        %v2130 = vmax.f32 %v2129, %v2079
        %v2131 = vmax.f32 %v2130, %v2083
        %v2132 = vmax.f32 %v2131, %v2087
        %v2133 = vmax.f32 %v2132, %v2091
        %v2134 = vmax.f32 %v2133, %v2095
        %v2135 = vmax.f32 %v2134, %v2099
        %v2136 = vmax.f32 %v2135, %v2103
        %v2137 = vmax.f32 %v2136, %v2107
        %v2138 = vmax.f32 %v2137, %v2111
        %v2139 = vmax.f32 %v2138, %v2115
        %v2140 = vmax.f32 %v2139, %v2119
        %v2141 = vmax.f32 %v2140, %v2123
        %v2142 = vrot.slane %v2141, 4
        %v2143 = vmax.f32 %v2141, %v2142
        %v2144 = vrot.slane %v2143, 2
        %v2145 = vmax.f32 %v2143, %v2144
        %v2146 = vrot.slane %v2145, 1
        %v2147 = vmax.f32 %v2145, %v2146
        %v2148 = vmax.f32 %v2064, %v2068
        %v2149 = vmax.f32 %v2148, %v2072
        %v2150 = vmax.f32 %v2149, %v2076
        %v2151 = vmax.f32 %v2150, %v2080
        %v2152 = vmax.f32 %v2151, %v2084
        %v2153 = vmax.f32 %v2152, %v2088
        %v2154 = vmax.f32 %v2153, %v2092
        %v2155 = vmax.f32 %v2154, %v2096
        %v2156 = vmax.f32 %v2155, %v2100
        %v2157 = vmax.f32 %v2156, %v2104
        %v2158 = vmax.f32 %v2157, %v2108
        %v2159 = vmax.f32 %v2158, %v2112
        %v2160 = vmax.f32 %v2159, %v2116
        %v2161 = vmax.f32 %v2160, %v2120
        %v2162 = vmax.f32 %v2161, %v2124
        %v2163 = vrot.slane %v2162, 4
        %v2164 = vmax.f32 %v2162, %v2163
        %v2165 = vrot.slane %v2164, 2
        %v2166 = vmax.f32 %v2164, %v2165
        %v2167 = vrot.slane %v2166, 1
        %v2168 = vmax.f32 %v2166, %v2167
        %v2169 = vmax.f32 %v2065, %v2069
        %v2170 = vmax.f32 %v2169, %v2073
        %v2171 = vmax.f32 %v2170, %v2077
        %v2172 = vmax.f32 %v2171, %v2081
        %v2173 = vmax.f32 %v2172, %v2085
        %v2174 = vmax.f32 %v2173, %v2089
        %v2175 = vmax.f32 %v2174, %v2093
        %v2176 = vmax.f32 %v2175, %v2097
        %v2177 = vmax.f32 %v2176, %v2101
        %v2178 = vmax.f32 %v2177, %v2105
        %v2179 = vmax.f32 %v2178, %v2109
        %v2180 = vmax.f32 %v2179, %v2113
        %v2181 = vmax.f32 %v2180, %v2117
        %v2182 = vmax.f32 %v2181, %v2121
        %v2183 = vmax.f32 %v2182, %v2125
        %v2184 = vrot.slane %v2183, 4
        %v2185 = vmax.f32 %v2183, %v2184
        %v2186 = vrot.slane %v2185, 2
        %v2187 = vmax.f32 %v2185, %v2186
        %v2188 = vrot.slane %v2187, 1
        %v2189 = vmax.f32 %v2187, %v2188
        %v2190 = vmax.f32 %v2066, %v2070
        %v2191 = vmax.f32 %v2190, %v2074
        %v2192 = vmax.f32 %v2191, %v2078
        %v2193 = vmax.f32 %v2192, %v2082
        %v2194 = vmax.f32 %v2193, %v2086
        %v2195 = vmax.f32 %v2194, %v2090
        %v2196 = vmax.f32 %v2195, %v2094
        %v2197 = vmax.f32 %v2196, %v2098
        %v2198 = vmax.f32 %v2197, %v2102
        %v2199 = vmax.f32 %v2198, %v2106
        %v2200 = vmax.f32 %v2199, %v2110
        %v2201 = vmax.f32 %v2200, %v2114
        %v2202 = vmax.f32 %v2201, %v2118
        %v2203 = vmax.f32 %v2202, %v2122
        %v2204 = vmax.f32 %v2203, %v2126
        %v2205 = vrot.slane %v2204, 4
        %v2206 = vmax.f32 %v2204, %v2205
        %v2207 = vrot.slane %v2206, 2
        %v2208 = vmax.f32 %v2206, %v2207
        %v2209 = vrot.slane %v2208, 1
        %v2210 = vmax.f32 %v2208, %v2209
        %v2211 = vld [vmem:[%s262] sm:$0xff]
        %v2212 = vld [vmem:[%s262 + $0x8] sm:$0xff]
        %v2213 = vld [vmem:[%s262 + $0x10] sm:$0xff]
        %v2214 = vld [vmem:[%s262 + $0x18] sm:$0xff]
        %v2215 = vmax.f32 %v2211, %v2147
        %v2216 = vmax.f32 %v2212, %v2168
        %v2217 = vmax.f32 %v2213, %v2189
        %v2218 = vmax.f32 %v2214, %v2210
        %2219 = vst [vmem:[%s262] sm:$0xff] %v2215
        %2220 = vst [vmem:[%s262 + $0x8] sm:$0xff] %v2216
        %2221 = vst [vmem:[%s262 + $0x10] sm:$0xff] %v2217
        %2222 = vst [vmem:[%s262 + $0x18] sm:$0xff] %v2218
        %s2223 = sand.u32 %s131, 1
        %s2224 = scalar_lea.sflag [#allocation4], %s2223
        %s2225 = sand.u32 %s131, 1
        %s2226 = smul.addr %s2225, 32
        %s2227 = scalar_lea.vmem [#allocation7], %s2226
        // Predicated region
        $region45: #{tpu_custom_call.1} parent=31 // pred_check
          %p2228 = pneg %p141
        $region46: #{tpu_custom_call.1} parent=31 // pred_check_branch
          %2230 = sbr.rel (%p2228) target = $region48
        $region47: #{tpu_custom_call.1} parent=31 // pred_region
          %2232 = vsyncadd %s2224, 0
          %s2233 = smul.addr %s29, 4
          %s2234 = smul.addr %s28, 8
          %s2235 = sadd.s32 %s2233, %s2234
          %s2236 = smul.addr %s2235, 8
          %s2237 = scalar_lea.hbm %s3, %s2236
          %s2239 = sshll.u32 %s2227, 4
          %s2240 = int_to_ptr.vmem [resolvable:$true] %s2239
          %s2241 = sshll.u32 %s2237, 4
          %s2242 = int_to_ptr.hbm [resolvable:$true] %s2241
          %2244 = dma.vmem_to_hbm [thread:$0]  %s2240, 512, %s2242, %s2224
        $region48: #{tpu_custom_call.1} parent=31 // pred_fallthru
          _
      $region32: #{tpu_custom_call.1} parent=5 // pred_fallthru
        _
      %p2245 = scmp.le.s32.totalorder 2, %s18
      // Predicated region
      $region49: #{tpu_custom_call.1} parent=5 // pred_check
        %p2246 = pneg %p2245
      $region50: #{tpu_custom_call.1} parent=5 // pred_check_branch
        %2248 = sbr.rel (%p2246) target = $region52
      $region51: #{tpu_custom_call.1} parent=5 // pred_region
        %s2249 = ssub.s32 %s18, 2
        // Predicated region
        $region53: #{tpu_custom_call.1} parent=51 // pred_check
          %p2250 = pneg %p147
        $region54: #{tpu_custom_call.1} parent=51 // pred_check_branch
          %2252 = sbr.rel (%p2250) target = $region56
        $region55: #{tpu_custom_call.1} parent=51 // pred_region
          %s2253 = sand.u32 %s132, 1
          %s2254 = scalar_lea.sflag [#allocation4], %s2253
          %s2255 = sand.u32 %s132, 1
          %s2256 = smul.addr %s2255, 32
          %s2257 = scalar_lea.vmem [#allocation7], %s2256
          %2259 = dma.done %s2254, 512
        $region56: #{tpu_custom_call.1} parent=51 // pred_fallthru
          _
      $region52: #{tpu_custom_call.1} parent=5 // pred_fallthru
        _
    $region6: #{tpu_custom_call.1} parent=1 // loop_footer
      %s22 = sadd.s32 1, %s18
    $region7: #{tpu_custom_call.1} parent=1 // loop_footer_branch
      %17 = sbr.rel target = $region3
    $region8: #{tpu_custom_call.1} parent=1 // loop_exit
      _
    %2260 = vsyncpa [#allocation3], 1
    %s2261 = scalar_lea.sflag [#allocation3], 1
    %2262 = vsyncpa %s2261, 1
    %2263 = vsyncpa [#allocation6], 1
    %s2264 = scalar_lea.sflag [#allocation6], 1
    %2265 = vsyncpa %s2264, 1
    %2266 = vsyncpa [#allocation4], 1
    %s2267 = scalar_lea.sflag [#allocation4], 1
    %2268 = vsyncpa %s2267, 1

</llo_original>
